<compile_context>
chip_gen: v6e
topology: v6e:2x2x1
jax: 0.10.0
libtpu: 0.0.40
codegen_flags: <defaults>
</compile_context>

<pallas_src>
import functools
import math

import jax
import jax.numpy as jnp
from jax import lax
from jax.experimental import pallas as pl
from jax.experimental.pallas import tpu as pltpu


def _round_up(x, m):
    return ((x + m - 1) // m) * m


def _pad_axis(x, axis, target):
    pad = target - x.shape[axis]
    if pad <= 0:
        return x
    widths = [(0, 0)] * x.ndim
    widths[axis] = (0, pad)
    return jnp.pad(x, widths)


def _neg_sq_dist(u, items):
    """-(||u - items||_2^2) via the norm expansion -(|u|^2 - 2 u.i + |i|^2).

    u: (TN, Hp), items: (TN, P, Hp) -> (TN, P).  Zero-padded Hp lanes contribute
    0 to every term, so lane padding is transparent.
    """
    u_norm = jnp.sum(u * u, axis=-1, keepdims=True)                   # (TN, 1)
    i_norm = jnp.sum(items * items, axis=-1)                          # (TN, P)
    # Cross term as a batched matmul (MXU) instead of materializing the
    # (TN, P, Hp) broadcast-difference temporary.
    cross = jnp.einsum("nqh,nph->nqp", u[:, None, :], items,
                       preferred_element_type=jnp.float32)[:, 0, :]   # (TN, P)
    return -(u_norm - 2.0 * cross + i_norm)


# ----------------------------------------------------------------------------
# Pallas kernel: fused RTN score hot-path for one N-tile
# ----------------------------------------------------------------------------
def _rtn_kernel(alpha, scale, P, Pp,
                x_ref, h0_ref, wih_ref, whh_ref, b_ref,
                ltu_ref, lti_ref, sti_ref, bias_ref,
                score_ref, hid_ref, pre_ref):
    T, TN, Hp = x_ref.shape
    wih = wih_ref[...]                               # (Hp, Hp)
    whh = whh_ref[...]                               # (Hp, Hp)
    b = b_ref[...]                                   # (1, Hp)

    # 1) Input projection hoisted out of the recurrence: one large MXU matmul
    #    over all T*TN rows, bias folded in.  (TN is a multiple of 8 so the
    #    (T, TN, Hp) <-> (T*TN, Hp) reshape is a tile-aligned no-op.)
    x_flat = x_ref[...].reshape(T * TN, Hp)
    pre = jnp.dot(x_flat, wih, preferred_element_type=jnp.float32) + b
    pre_ref[...] = pre.reshape(T, TN, Hp)

    # 2) Serial recurrence: only h @ W_hh + tanh per step.
    def step(t, h):
        return jnp.tanh(pre_ref[t]
                        + jnp.dot(h, whh, preferred_element_type=jnp.float32))

    h = lax.fori_loop(0, T, step, h0_ref[...], unroll=(T <= 16))
    hid_ref[...] = h                                 # lane-dense (TN, Hp) store

    # 3) Long-/short-term translation scores + combine_score.
    lt_score = _neg_sq_dist(ltu_ref[...], lti_ref[...])      # (TN, P)
    st_score = _neg_sq_dist(h, sti_ref[...])                 # (TN, P)

    score = lt_score * alpha + st_score * (1.0 - alpha)
    score = score * scale + bias_ref[...]
    if Pp > P:                                        # lane-dense padded store
        score = jnp.concatenate(
            [score, jnp.zeros((TN, Pp - P), jnp.float32)], axis=-1)
    score_ref[...] = score


def rtn_combined_score(x_seq, h0, w_ih, w_hh, b_rnn, lt_u, lt_i, st_i, i_bias,
                       *, alpha, scale):
    """Runs the fused Pallas kernel. Returns (combined_score (N,P), hidden (N,H))."""
    T, N, H = x_seq.shape
    P = lt_i.shape[1]

    Hp = _round_up(H, 128)                 # lane-align hidden dim
    Pp = _round_up(P, 128)                 # lane-align score output
    TN = 256 if N >= 256 else _round_up(N, 8)   # rows per grid block
    Np = _round_up(N, TN)

    f32 = jnp.float32
    x_p = _pad_axis(_pad_axis(x_seq.astype(f32), 2, Hp), 1, Np)
    h0_p = _pad_axis(_pad_axis(h0.astype(f32), 1, Hp), 0, Np)
    wih_p = _pad_axis(_pad_axis(w_ih.astype(f32), 1, Hp), 0, Hp)
    whh_p = _pad_axis(_pad_axis(w_hh.astype(f32), 1, Hp), 0, Hp)
    b_p = _pad_axis(b_rnn.astype(f32).reshape(1, H), 1, Hp)
    ltu_p = _pad_axis(_pad_axis(lt_u.astype(f32), 1, Hp), 0, Np)
    lti_p = _pad_axis(_pad_axis(lt_i.astype(f32), 2, Hp), 0, Np)
    sti_p = _pad_axis(_pad_axis(st_i.astype(f32), 2, Hp), 0, Np)
    bias_p = _pad_axis(i_bias.astype(f32), 0, Np)

    kernel = functools.partial(_rtn_kernel, float(alpha), float(scale), P, Pp)

    score, hidden = pl.pallas_call(
        kernel,
        grid=(Np // TN,),
        in_specs=[
            pl.BlockSpec((T, TN, Hp), lambda i: (0, i, 0)),     # x_seq (time-major)
            pl.BlockSpec((TN, Hp), lambda i: (i, 0)),           # h0
            pl.BlockSpec((Hp, Hp), lambda i: (0, 0)),           # W_ih
            pl.BlockSpec((Hp, Hp), lambda i: (0, 0)),           # W_hh
            pl.BlockSpec((1, Hp), lambda i: (0, 0)),            # b
            pl.BlockSpec((TN, Hp), lambda i: (i, 0)),           # lt_u
            pl.BlockSpec((TN, P, Hp), lambda i: (i, 0, 0)),     # lt_i
            pl.BlockSpec((TN, P, Hp), lambda i: (i, 0, 0)),     # st_i
            pl.BlockSpec((TN, P), lambda i: (i, 0)),            # item bias
        ],
        out_specs=(pl.BlockSpec((TN, Pp), lambda i: (i, 0)),
                   pl.BlockSpec((TN, Hp), lambda i: (i, 0))),
        out_shape=(jax.ShapeDtypeStruct((Np, Pp), jnp.float32),
                   jax.ShapeDtypeStruct((Np, Hp), jnp.float32)),
        scratch_shapes=[pltpu.VMEM((T, TN, Hp), jnp.float32)],   # hoisted x@W_ih
        compiler_params=pltpu.CompilerParams(
            dimension_semantics=("parallel",)),
    )(x_p, h0_p, wih_p, whh_p, b_p, ltu_p, lti_p, sti_p, bias_p)

    return score[:N, :P], hidden[:N, :H]


# ----------------------------------------------------------------------------
# RTN.forward (users, users_items, pred_items, weight=None, hidden=None)
#   -> (obj_loss, reg_loss, hidden)       (weight=None path)
# ----------------------------------------------------------------------------
def rtn_forward(params, users, users_items, pred_items,
                *, n_neg, alpha, scale, l_reg, hidden=None):
    N = users.shape[0]
    H = params["lt_u_emb"].shape[1]

    # Embedding gathers: glue, kept in plain JAX.
    lt_u = params["lt_u_emb"][users]                  # (N, H)
    lt_i = params["lt_i_emb"][pred_items]             # (N, P, H)
    st_i = params["st_i_emb"][pred_items]             # (N, P, H)
    i_b = params["i_bias"][pred_items]                # (N, P, 1)
    x_seq = params["st_i_emb"][users_items]           # (N, T, H)
    x_seq = jnp.transpose(x_seq, (1, 0, 2))           # (T, N, H) time-major

    if hidden is None:                                # st.init_hidden
        hidden = jnp.zeros((N, H), jnp.float32)

    score, hidden = rtn_combined_score(
        x_seq, hidden, params["w_ih"], params["w_hh"], params["b_rnn"],
        lt_u, lt_i, st_i, i_b[..., 0], alpha=alpha, scale=scale)

    # rtn_loss (weight=None): rows interleaved as (pos, neg_1..neg_n) groups.
    P = score.shape[1]
    grp = score.reshape(-1, n_neg + 1, P)
    pos = grp[:, :1, :]                               # predict[0::n+1]
    neg = grp[:, 1:, :]                               # predict[i+1::n+1]
    obj_loss = jnp.mean(-jax.nn.log_sigmoid(pos - neg))

    # regularize (weight=None): mean of squared embeddings.
    u_lt_reg = jnp.mean(lt_u[:, None, :] ** 2)
    i_lt_reg = jnp.mean(lt_i ** 2)
    i_st_reg = jnp.mean(st_i ** 2)
    i_bias_reg = jnp.mean(i_b ** 2)
    reg_loss = (u_lt_reg + i_lt_reg + i_st_reg + i_bias_reg) * l_reg

    return obj_loss, reg_loss, hidden


# Pure-JAX reference (no Pallas) for validation.
def reference_forward(params, users, users_items, pred_items,
                      *, n_neg, alpha, scale, l_reg):
    lt_u = params["lt_u_emb"][users]
    lt_i = params["lt_i_emb"][pred_items]
    st_i = params["st_i_emb"][pred_items]
    i_b = params["i_bias"][pred_items]
    x = params["st_i_emb"][users_items]               # (N, T, H)
    N, T, H = x.shape
    h = jnp.zeros((N, H), jnp.float32)
    for t in range(T):
        h = jnp.tanh(x[:, t] @ params["w_ih"] + h @ params["w_hh"]
                     + params["b_rnn"])
    lt_score = -jnp.sum(jnp.abs(lt_u[:, None, :] - lt_i) ** 2, -1)
    st_score = -jnp.sum(jnp.abs(h[:, None, :] - st_i) ** 2, -1)
    score = (lt_score * alpha + st_score * (1.0 - alpha)) * scale + i_b[..., 0]
    P = score.shape[1]
    grp = score.reshape(-1, n_neg + 1, P)
    obj = jnp.mean(-jax.nn.log_sigmoid(grp[:, :1] - grp[:, 1:]))
    reg = (jnp.mean(lt_u[:, None, :] ** 2) + jnp.mean(lt_i ** 2)
           + jnp.mean(st_i ** 2) + jnp.mean(i_b ** 2)) * l_reg
    return obj, reg, h


if __name__ == "__main__":
    # Small, forward-consistent shapes.
    n_users, n_items, H = 16, 64, 32
    B, n_neg, T, P = 2, 3, 8, 4
    alpha, scale, l_reg = 0.5, 5.0, 0.01
    N = B * (n_neg + 1)                                # interleaved pos/neg rows

    key = jax.random.PRNGKey(0)
    ks = jax.random.split(key, 8)

    # Deterministic parameter init (follows ModEmbedding.reset_parameters).
    std = math.sqrt(0.1 / H)
    lt_u_emb = std * jax.random.normal(ks[0], (n_users, H), jnp.float32)
    lt_i_emb = std * jax.random.normal(ks[1], (n_items, H), jnp.float32)
    st_i_emb = std * jax.random.normal(ks[2], (n_items, H), jnp.float32)
    lt_i_emb = lt_i_emb.at[0].set(0.0)                 # padding_idx=0
    st_i_emb = st_i_emb.at[0].set(0.0)
    i_bias = jnp.zeros((n_items, 1), jnp.float32)      # embedding_dim==1 -> const 0

    rnn_std = 1.0 / math.sqrt(H)
    w_ih = rnn_std * jax.random.normal(ks[3], (H, H), jnp.float32)
    w_hh = rnn_std * jax.random.normal(ks[4], (H, H), jnp.float32)
    b_rnn = rnn_std * jax.random.normal(ks[5], (1, H), jnp.float32)

    params = dict(lt_u_emb=lt_u_emb, lt_i_emb=lt_i_emb, st_i_emb=st_i_emb,
                  i_bias=i_bias, w_ih=w_ih, w_hh=w_hh, b_rnn=b_rnn)

    # Inputs: each user row is replicated (n_neg + 1) times (pos + negs).
    users = jnp.repeat(jax.random.randint(ks[6], (B,), 0, n_users), n_neg + 1)
    users_items = jnp.repeat(
        jax.random.randint(ks[7], (B, T), 1, n_items), n_neg + 1, axis=0)
    pred_items = jax.random.randint(jax.random.PRNGKey(123), (N, P), 1, n_items)

    fwd = jax.jit(functools.partial(
        rtn_forward, n_neg=n_neg, alpha=alpha, scale=scale, l_reg=l_reg))
    obj_loss, reg_loss, hidden = fwd(params, users, users_items, pred_items)
    jax.block_until_ready((obj_loss, reg_loss, hidden))

    # Validate against pure-JAX reference.
    r_obj, r_reg, r_hid = reference_forward(
        params, users, users_items, pred_items,
        n_neg=n_neg, alpha=alpha, scale=scale, l_reg=l_reg)
    assert jnp.allclose(obj_loss, r_obj, rtol=2e-3, atol=2e-3), (obj_loss, r_obj)
    assert jnp.allclose(reg_loss, r_reg, rtol=2e-3, atol=2e-3), (reg_loss, r_reg)
    assert jnp.allclose(hidden, r_hid, rtol=2e-3, atol=2e-3)

    print("KERNEL_OK")
</pallas_src>

<mosaic_0001>
module attributes {stable_mosaic.version = 11 : i64} {
  func.func @_rtn_kernel(%arg0: i32, %arg1: memref<8x8x128xf32, #tpu.memory_space<vmem>>, %arg2: memref<8x128xf32, #tpu.memory_space<vmem>>, %arg3: memref<128x128xf32, #tpu.memory_space<vmem>>, %arg4: memref<128x128xf32, #tpu.memory_space<vmem>>, %arg5: memref<1x128xf32, #tpu.memory_space<vmem>>, %arg6: memref<8x128xf32, #tpu.memory_space<vmem>>, %arg7: memref<8x4x128xf32, #tpu.memory_space<vmem>>, %arg8: memref<8x4x128xf32, #tpu.memory_space<vmem>>, %arg9: memref<8x4xf32, #tpu.memory_space<vmem>>, %arg10: memref<8x128xf32, #tpu.memory_space<vmem>>, %arg11: memref<8x128xf32, #tpu.memory_space<vmem>>, %arg12: memref<8x8x128xf32, #tpu.memory_space<vmem>>) attributes {dimension_semantics = [#tpu.dimension_semantics<parallel>], iteration_bounds = array<i64: 1>, scalar_prefetch = 0 : i64, scratch_operands = 1 : i64, tpu.core_type = #tpu.core_type<tc>, window_params = [{transform_indices = @transform_0, window_bounds = array<i64: 8, 8, 128>}, {transform_indices = @transform_1, window_bounds = array<i64: 8, 128>}, {pipeline_mode = #tpu.pipeline_mode<synchronous>, transform_indices = @transform_2, window_bounds = array<i64: 128, 128>}, {pipeline_mode = #tpu.pipeline_mode<synchronous>, transform_indices = @transform_3, window_bounds = array<i64: 128, 128>}, {pipeline_mode = #tpu.pipeline_mode<synchronous>, transform_indices = @transform_4, window_bounds = array<i64: 1, 128>}, {transform_indices = @transform_5, window_bounds = array<i64: 8, 128>}, {transform_indices = @transform_6, window_bounds = array<i64: 8, 4, 128>}, {transform_indices = @transform_7, window_bounds = array<i64: 8, 4, 128>}, {transform_indices = @transform_8, window_bounds = array<i64: 8, 4>}, {transform_indices = @transform_9, window_bounds = array<i64: 8, 128>}, {transform_indices = @transform_10, window_bounds = array<i64: 8, 128>}]} {
    %c0 = arith.constant 0 : index
    %c0_0 = arith.constant 0 : index
    %0 = vector.load %arg3[%c0, %c0_0] : memref<128x128xf32, #tpu.memory_space<vmem>>, vector<128x128xf32>
    %c0_1 = arith.constant 0 : index
    %c0_2 = arith.constant 0 : index
    %1 = vector.load %arg4[%c0_1, %c0_2] : memref<128x128xf32, #tpu.memory_space<vmem>>, vector<128x128xf32>
    %c0_3 = arith.constant 0 : index
    %c0_4 = arith.constant 0 : index
    %2 = vector.load %arg5[%c0_3, %c0_4] : memref<1x128xf32, #tpu.memory_space<vmem>>, vector<1x128xf32>
    %c0_5 = arith.constant 0 : index
    %c0_6 = arith.constant 0 : index
    %c0_7 = arith.constant 0 : index
    %3 = vector.load %arg1[%c0_5, %c0_6, %c0_7] : memref<8x8x128xf32, #tpu.memory_space<vmem>>, vector<8x8x128xf32>
    %4 = vector.shape_cast %3 : vector<8x8x128xf32> to vector<64x128xf32>
    %cst = arith.constant dense<0.000000e+00> : vector<64x128xf32>
    %5 = tpu.matmul %4, %0, %cst {dimension_numbers = #tpu.dot_dimension_numbers<[1], [0], [0], [1], [0, 0, 1, 1], [], []>} : vector<64x128xf32>, vector<128x128xf32>, vector<64x128xf32> -> vector<64x128xf32>
    %6 = vector.broadcast %2 : vector<1x128xf32> to vector<64x128xf32>
    %7 = arith.addf %5, %6 : vector<64x128xf32>
    %8 = vector.shape_cast %7 : vector<64x128xf32> to vector<8x8x128xf32>
    %c0_8 = arith.constant 0 : index
    %c0_9 = arith.constant 0 : index
    %c0_10 = arith.constant 0 : index
    %9 = vector.load %arg12[%c0_8, %c0_9, %c0_10] : memref<8x8x128xf32, #tpu.memory_space<vmem>>, vector<8x8x128xf32>
    tpu.vector_store %arg12[%c0_8, %c0_9, %c0_10], %8 {strides = array<i32>} : memref<8x8x128xf32, #tpu.memory_space<vmem>>, vector<8x8x128xf32>,
    %c0_11 = arith.constant 0 : index
    %c0_12 = arith.constant 0 : index
    %10 = vector.load %arg2[%c0_11, %c0_12] : memref<8x128xf32, #tpu.memory_space<vmem>>, vector<8x128xf32>
    %c0_i32 = arith.constant 0 : i32
    %11 = arith.index_cast %c0_i32 : i32 to index
    %c0_13 = arith.constant 0 : index
    %c0_14 = arith.constant 0 : index
    %12 = vector.load %arg12[%11, %c0_13, %c0_14] : memref<8x8x128xf32, #tpu.memory_space<vmem>>, vector<1x8x128xf32>
    %13 = vector.shape_cast %12 : vector<1x8x128xf32> to vector<8x128xf32>
    %cst_15 = arith.constant dense<0.000000e+00> : vector<8x128xf32>
    %14 = tpu.matmul %10, %1, %cst_15 {dimension_numbers = #tpu.dot_dimension_numbers<[1], [0], [0], [1], [0, 0, 1, 1], [], []>} : vector<8x128xf32>, vector<128x128xf32>, vector<8x128xf32> -> vector<8x128xf32>
    %15 = arith.addf %13, %14 : vector<8x128xf32>
    %16 = math.tanh %15 : vector<8x128xf32>
    %c1_i32 = arith.constant 1 : i32
    %17 = arith.index_cast %c1_i32 : i32 to index
    %c0_16 = arith.constant 0 : index
    %c0_17 = arith.constant 0 : index
    %18 = vector.load %arg12[%17, %c0_16, %c0_17] : memref<8x8x128xf32, #tpu.memory_space<vmem>>, vector<1x8x128xf32>
    %19 = vector.shape_cast %18 : vector<1x8x128xf32> to vector<8x128xf32>
    %cst_18 = arith.constant dense<0.000000e+00> : vector<8x128xf32>
    %20 = tpu.matmul %16, %1, %cst_18 {dimension_numbers = #tpu.dot_dimension_numbers<[1], [0], [0], [1], [0, 0, 1, 1], [], []>} : vector<8x128xf32>, vector<128x128xf32>, vector<8x128xf32> -> vector<8x128xf32>
    %21 = arith.addf %19, %20 : vector<8x128xf32>
    %22 = math.tanh %21 : vector<8x128xf32>
    %c2_i32 = arith.constant 2 : i32
    %23 = arith.index_cast %c2_i32 : i32 to index
    %c0_19 = arith.constant 0 : index
    %c0_20 = arith.constant 0 : index
    %24 = vector.load %arg12[%23, %c0_19, %c0_20] : memref<8x8x128xf32, #tpu.memory_space<vmem>>, vector<1x8x128xf32>
    %25 = vector.shape_cast %24 : vector<1x8x128xf32> to vector<8x128xf32>
    %cst_21 = arith.constant dense<0.000000e+00> : vector<8x128xf32>
    %26 = tpu.matmul %22, %1, %cst_21 {dimension_numbers = #tpu.dot_dimension_numbers<[1], [0], [0], [1], [0, 0, 1, 1], [], []>} : vector<8x128xf32>, vector<128x128xf32>, vector<8x128xf32> -> vector<8x128xf32>
    %27 = arith.addf %25, %26 : vector<8x128xf32>
    %28 = math.tanh %27 : vector<8x128xf32>
    %c3_i32 = arith.constant 3 : i32
    %29 = arith.index_cast %c3_i32 : i32 to index
    %c0_22 = arith.constant 0 : index
    %c0_23 = arith.constant 0 : index
    %30 = vector.load %arg12[%29, %c0_22, %c0_23] : memref<8x8x128xf32, #tpu.memory_space<vmem>>, vector<1x8x128xf32>
    %31 = vector.shape_cast %30 : vector<1x8x128xf32> to vector<8x128xf32>
    %cst_24 = arith.constant dense<0.000000e+00> : vector<8x128xf32>
    %32 = tpu.matmul %28, %1, %cst_24 {dimension_numbers = #tpu.dot_dimension_numbers<[1], [0], [0], [1], [0, 0, 1, 1], [], []>} : vector<8x128xf32>, vector<128x128xf32>, vector<8x128xf32> -> vector<8x128xf32>
    %33 = arith.addf %31, %32 : vector<8x128xf32>
    %34 = math.tanh %33 : vector<8x128xf32>
    %c4_i32 = arith.constant 4 : i32
    %35 = arith.index_cast %c4_i32 : i32 to index
    %c0_25 = arith.constant 0 : index
    %c0_26 = arith.constant 0 : index
    %36 = vector.load %arg12[%35, %c0_25, %c0_26] : memref<8x8x128xf32, #tpu.memory_space<vmem>>, vector<1x8x128xf32>
    %37 = vector.shape_cast %36 : vector<1x8x128xf32> to vector<8x128xf32>
    %cst_27 = arith.constant dense<0.000000e+00> : vector<8x128xf32>
    %38 = tpu.matmul %34, %1, %cst_27 {dimension_numbers = #tpu.dot_dimension_numbers<[1], [0], [0], [1], [0, 0, 1, 1], [], []>} : vector<8x128xf32>, vector<128x128xf32>, vector<8x128xf32> -> vector<8x128xf32>
    %39 = arith.addf %37, %38 : vector<8x128xf32>
    %40 = math.tanh %39 : vector<8x128xf32>
    %c5_i32 = arith.constant 5 : i32
    %41 = arith.index_cast %c5_i32 : i32 to index
    %c0_28 = arith.constant 0 : index
    %c0_29 = arith.constant 0 : index
    %42 = vector.load %arg12[%41, %c0_28, %c0_29] : memref<8x8x128xf32, #tpu.memory_space<vmem>>, vector<1x8x128xf32>
    %43 = vector.shape_cast %42 : vector<1x8x128xf32> to vector<8x128xf32>
    %cst_30 = arith.constant dense<0.000000e+00> : vector<8x128xf32>
    %44 = tpu.matmul %40, %1, %cst_30 {dimension_numbers = #tpu.dot_dimension_numbers<[1], [0], [0], [1], [0, 0, 1, 1], [], []>} : vector<8x128xf32>, vector<128x128xf32>, vector<8x128xf32> -> vector<8x128xf32>
    %45 = arith.addf %43, %44 : vector<8x128xf32>
    %46 = math.tanh %45 : vector<8x128xf32>
    %c6_i32 = arith.constant 6 : i32
    %47 = arith.index_cast %c6_i32 : i32 to index
    %c0_31 = arith.constant 0 : index
    %c0_32 = arith.constant 0 : index
    %48 = vector.load %arg12[%47, %c0_31, %c0_32] : memref<8x8x128xf32, #tpu.memory_space<vmem>>, vector<1x8x128xf32>
    %49 = vector.shape_cast %48 : vector<1x8x128xf32> to vector<8x128xf32>
    %cst_33 = arith.constant dense<0.000000e+00> : vector<8x128xf32>
    %50 = tpu.matmul %46, %1, %cst_33 {dimension_numbers = #tpu.dot_dimension_numbers<[1], [0], [0], [1], [0, 0, 1, 1], [], []>} : vector<8x128xf32>, vector<128x128xf32>, vector<8x128xf32> -> vector<8x128xf32>
    %51 = arith.addf %49, %50 : vector<8x128xf32>
    %52 = math.tanh %51 : vector<8x128xf32>
    %c7_i32 = arith.constant 7 : i32
    %53 = arith.index_cast %c7_i32 : i32 to index
    %c0_34 = arith.constant 0 : index
    %c0_35 = arith.constant 0 : index
    %54 = vector.load %arg12[%53, %c0_34, %c0_35] : memref<8x8x128xf32, #tpu.memory_space<vmem>>, vector<1x8x128xf32>
    %55 = vector.shape_cast %54 : vector<1x8x128xf32> to vector<8x128xf32>
    %cst_36 = arith.constant dense<0.000000e+00> : vector<8x128xf32>
    %56 = tpu.matmul %52, %1, %cst_36 {dimension_numbers = #tpu.dot_dimension_numbers<[1], [0], [0], [1], [0, 0, 1, 1], [], []>} : vector<8x128xf32>, vector<128x128xf32>, vector<8x128xf32> -> vector<8x128xf32>
    %57 = arith.addf %55, %56 : vector<8x128xf32>
    %58 = math.tanh %57 : vector<8x128xf32>
    %c8_i32 = arith.constant 8 : i32
    %c0_37 = arith.constant 0 : index
    %c0_38 = arith.constant 0 : index
    %59 = vector.load %arg11[%c0_37, %c0_38] : memref<8x128xf32, #tpu.memory_space<vmem>>, vector<8x128xf32>
    tpu.vector_store %arg11[%c0_37, %c0_38], %58 {strides = array<i32>} : memref<8x128xf32, #tpu.memory_space<vmem>>, vector<8x128xf32>,
    %c0_39 = arith.constant 0 : index
    %c0_40 = arith.constant 0 : index
    %60 = vector.load %arg6[%c0_39, %c0_40] : memref<8x128xf32, #tpu.memory_space<vmem>>, vector<8x128xf32>
    %c0_41 = arith.constant 0 : index
    %c0_42 = arith.constant 0 : index
    %c0_43 = arith.constant 0 : index
    %61 = vector.load %arg7[%c0_41, %c0_42, %c0_43] : memref<8x4x128xf32, #tpu.memory_space<vmem>>, vector<8x4x128xf32>
    %62 = arith.mulf %60, %60 : vector<8x128xf32>
    %cst_44 = arith.constant dense<0.000000e+00> : vector<8xf32>
    %63 = vector.multi_reduction <add>, %62, %cst_44 [1] : vector<8x128xf32> to vector<8xf32>
    %64 = vector.shape_cast %63 : vector<8xf32> to vector<8x1xf32>
    %65 = arith.mulf %61, %61 : vector<8x4x128xf32>
    %cst_45 = arith.constant dense<0.000000e+00> : vector<8x4xf32>
    %66 = vector.multi_reduction <add>, %65, %cst_45 [2] : vector<8x4x128xf32> to vector<8x4xf32>
    %67 = vector.shape_cast %60 : vector<8x128xf32> to vector<8x1x128xf32>
    "tpu.trace_start"() <{level = 10 : i32, message = "nqh,nph->nqp"}> : () -> ()
    %cst_46 = arith.constant dense<0.000000e+00> : vector<8x1x4xf32>
    %68 = tpu.matmul %67, %61, %cst_46 {dimension_numbers = #tpu.dot_dimension_numbers<[2], [2], [1], [1], [0, 0, 0, 1, 1, 1], [0], [0]>} : vector<8x1x128xf32>, vector<8x4x128xf32>, vector<8x1x4xf32> -> vector<8x1x4xf32>
    "tpu.trace_stop"() : () -> ()
    %69 = vector.shape_cast %68 : vector<8x1x4xf32> to vector<8x4xf32>
    %cst_47 = arith.constant 2.000000e+00 : f32
    %70 = vector.broadcast %cst_47 : f32 to vector<8x4xf32>
    %71 = arith.mulf %70, %69 : vector<8x4xf32>
    %72 = vector.broadcast %64 : vector<8x1xf32> to vector<8x4xf32>
    %73 = arith.subf %72, %71 : vector<8x4xf32>
    %74 = arith.addf %73, %66 : vector<8x4xf32>
    %cst_48 = arith.constant 0.000000e+00 : f32
    %75 = vector.broadcast %cst_48 : f32 to vector<8x4xf32>
    %76 = arith.subf %75, %74 : vector<8x4xf32>
    %c0_49 = arith.constant 0 : index
    %c0_50 = arith.constant 0 : index
    %c0_51 = arith.constant 0 : index
    %77 = vector.load %arg8[%c0_49, %c0_50, %c0_51] : memref<8x4x128xf32, #tpu.memory_space<vmem>>, vector<8x4x128xf32>
    %78 = arith.mulf %58, %58 : vector<8x128xf32>
    %cst_52 = arith.constant dense<0.000000e+00> : vector<8xf32>
    %79 = vector.multi_reduction <add>, %78, %cst_52 [1] : vector<8x128xf32> to vector<8xf32>
    %80 = vector.shape_cast %79 : vector<8xf32> to vector<8x1xf32>
    %81 = arith.mulf %77, %77 : vector<8x4x128xf32>
    %cst_53 = arith.constant dense<0.000000e+00> : vector<8x4xf32>
    %82 = vector.multi_reduction <add>, %81, %cst_53 [2] : vector<8x4x128xf32> to vector<8x4xf32>
    %83 = vector.shape_cast %58 : vector<8x128xf32> to vector<8x1x128xf32>
    "tpu.trace_start"() <{level = 10 : i32, message = "nqh,nph->nqp"}> : () -> ()
    %cst_54 = arith.constant dense<0.000000e+00> : vector<8x1x4xf32>
    %84 = tpu.matmul %83, %77, %cst_54 {dimension_numbers = #tpu.dot_dimension_numbers<[2], [2], [1], [1], [0, 0, 0, 1, 1, 1], [0], [0]>} : vector<8x1x128xf32>, vector<8x4x128xf32>, vector<8x1x4xf32> -> vector<8x1x4xf32>
    "tpu.trace_stop"() : () -> ()
    %85 = vector.shape_cast %84 : vector<8x1x4xf32> to vector<8x4xf32>
    %cst_55 = arith.constant 2.000000e+00 : f32
    %86 = vector.broadcast %cst_55 : f32 to vector<8x4xf32>
    %87 = arith.mulf %86, %85 : vector<8x4xf32>
    %88 = vector.broadcast %80 : vector<8x1xf32> to vector<8x4xf32>
    %89 = arith.subf %88, %87 : vector<8x4xf32>
    %90 = arith.addf %89, %82 : vector<8x4xf32>
    %cst_56 = arith.constant 0.000000e+00 : f32
    %91 = vector.broadcast %cst_56 : f32 to vector<8x4xf32>
    %92 = arith.subf %91, %90 : vector<8x4xf32>
    %cst_57 = arith.constant 5.000000e-01 : f32
    %93 = vector.broadcast %cst_57 : f32 to vector<8x4xf32>
    %94 = arith.mulf %76, %93 : vector<8x4xf32>
    %cst_58 = arith.constant 5.000000e-01 : f32
    %95 = vector.broadcast %cst_58 : f32 to vector<8x4xf32>
    %96 = arith.mulf %92, %95 : vector<8x4xf32>
    %97 = arith.addf %94, %96 : vector<8x4xf32>
    %cst_59 = arith.constant 5.000000e+00 : f32
    %98 = vector.broadcast %cst_59 : f32 to vector<8x4xf32>
    %99 = arith.mulf %97, %98 : vector<8x4xf32>
    %c0_60 = arith.constant 0 : index
    %c0_61 = arith.constant 0 : index
    %100 = vector.load %arg9[%c0_60, %c0_61] : memref<8x4xf32, #tpu.memory_space<vmem>>, vector<8x4xf32>
    %101 = arith.addf %99, %100 : vector<8x4xf32>
    %cst_62 = arith.constant 0.000000e+00 : f32
    %102 = vector.broadcast %cst_62 : f32 to vector<8x124xf32>
    %103 = tpu.concatenate %101, %102 in 1 : vector<8x4xf32>, vector<8x124xf32> -> vector<8x128xf32>
    %c0_63 = arith.constant 0 : index
    %c0_64 = arith.constant 0 : index
    %104 = vector.load %arg10[%c0_63, %c0_64] : memref<8x128xf32, #tpu.memory_space<vmem>>, vector<8x128xf32>
    tpu.vector_store %arg10[%c0_63, %c0_64], %103 {strides = array<i32>} : memref<8x128xf32, #tpu.memory_space<vmem>>, vector<8x128xf32>,
    return
  }
  func.func @transform_0(%arg0: i32) -> (i32, i32, i32) {
    %c0_i32 = arith.constant 0 : i32
    %c0_i32_0 = arith.constant 0 : i32
    %c0_i32_1 = arith.constant 0 : i32
    return %c0_i32, %arg0, %c0_i32_0 : i32, i32, i32
  }
  func.func @transform_1(%arg0: i32) -> (i32, i32) {
    %c0_i32 = arith.constant 0 : i32
    %c0_i32_0 = arith.constant 0 : i32
    return %arg0, %c0_i32 : i32, i32
  }
  func.func @transform_2(%arg0: i32) -> (i32, i32) {
    %c0_i32 = arith.constant 0 : i32
    %c0_i32_0 = arith.constant 0 : i32
    %c0_i32_1 = arith.constant 0 : i32
    return %c0_i32, %c0_i32_0 : i32, i32
  }
  func.func @transform_3(%arg0: i32) -> (i32, i32) {
    %c0_i32 = arith.constant 0 : i32
    %c0_i32_0 = arith.constant 0 : i32
    %c0_i32_1 = arith.constant 0 : i32
    return %c0_i32, %c0_i32_0 : i32, i32
  }
  func.func @transform_4(%arg0: i32) -> (i32, i32) {
    %c0_i32 = arith.constant 0 : i32
    %c0_i32_0 = arith.constant 0 : i32
    %c0_i32_1 = arith.constant 0 : i32
    return %c0_i32, %c0_i32_0 : i32, i32
  }
  func.func @transform_5(%arg0: i32) -> (i32, i32) {
    %c0_i32 = arith.constant 0 : i32
    %c0_i32_0 = arith.constant 0 : i32
    return %arg0, %c0_i32 : i32, i32
  }
  func.func @transform_6(%arg0: i32) -> (i32, i32, i32) {
    %c0_i32 = arith.constant 0 : i32
    %c0_i32_0 = arith.constant 0 : i32
    %c0_i32_1 = arith.constant 0 : i32
    return %arg0, %c0_i32, %c0_i32_0 : i32, i32, i32
  }
  func.func @transform_7(%arg0: i32) -> (i32, i32, i32) {
    %c0_i32 = arith.constant 0 : i32
    %c0_i32_0 = arith.constant 0 : i32
    %c0_i32_1 = arith.constant 0 : i32
    return %arg0, %c0_i32, %c0_i32_0 : i32, i32, i32
  }
  func.func @transform_8(%arg0: i32) -> (i32, i32) {
    %c0_i32 = arith.constant 0 : i32
    %c0_i32_0 = arith.constant 0 : i32
    return %arg0, %c0_i32 : i32, i32
  }
  func.func @transform_9(%arg0: i32) -> (i32, i32) {
    %c0_i32 = arith.constant 0 : i32
    %c0_i32_0 = arith.constant 0 : i32
    return %arg0, %c0_i32 : i32, i32
  }
  func.func @transform_10(%arg0: i32) -> (i32, i32) {
    %c0_i32 = arith.constant 0 : i32
    %c0_i32_0 = arith.constant 0 : i32
    return %arg0, %c0_i32 : i32, i32
  }
}

</mosaic_0001>

<llo_original>
// kernel: squeeze.1
$region0: #{squeeze.1}
  %s0 = inlined_call_operand.vmem [shape: f32[32], index: 0, kind: input, shape index: {}]
  %s1 = inlined_call_operand.vmem [shape: f32[8,4], index: 1, kind: output, shape index: {}]
  $region1: #{squeeze.1} parent=0
    #allocation0 [shape = 'u8[4096]{0}', space=vmem, size = 0x1000, scoped, tag = 'scoped mem for input reshape']
    %s3 = sshll.u32 1, 1
    %s4 = ssub.s32 %s3, 1
    %v5 = vld [vmem:[%s0] sm:%s4]
    %6 = vst [vmem:[#allocation0] sm:%s4] %v5
    %v7 = vld [vmem:[#allocation0] sm:$0x1]
    %vm8 = vcmask 31744
    %9 = vst.msk [vmem:[%s1] sm:$0x1] %vm8, %v7
    %v10 = vld [vmem:[#allocation0] sm:$0x1]
    %11 = vrot.lane.b32.xlu0 %v10, 124
    %v12 = vpop.permute.xlu0 %11
    %vm13 = vcmask 31744
    %s14 = scalar_lea.vmem %s1, 1
    %15 = vst.msk [vmem:[%s14] sm:$0x1] %vm13, %v12
    %v16 = vld [vmem:[#allocation0] sm:$0x1]
    %17 = vrot.lane.b32.xlu0 %v16, 120
    %v18 = vpop.permute.xlu0 %17
    %vm19 = vcmask 31744
    %s20 = scalar_lea.vmem %s1, 2
    %21 = vst.msk [vmem:[%s20] sm:$0x1] %vm19, %v18
    %v22 = vld [vmem:[#allocation0] sm:$0x1]
    %23 = vrot.lane.b32.xlu0 %v22, 116
    %v24 = vpop.permute.xlu0 %23
    %vm25 = vcmask 31744
    %s26 = scalar_lea.vmem %s1, 3
    %27 = vst.msk [vmem:[%s26] sm:$0x1] %vm25, %v24
    %v28 = vld [vmem:[#allocation0] sm:$0x1]
    %29 = vrot.lane.b32.xlu0 %v28, 112
    %v30 = vpop.permute.xlu0 %29
    %vm31 = vcmask 31744
    %s32 = scalar_lea.vmem %s1, 4
    %33 = vst.msk [vmem:[%s32] sm:$0x1] %vm31, %v30
    %v34 = vld [vmem:[#allocation0] sm:$0x1]
    %35 = vrot.lane.b32.xlu0 %v34, 108
    %v36 = vpop.permute.xlu0 %35
    %vm37 = vcmask 31744
    %s38 = scalar_lea.vmem %s1, 5
    %39 = vst.msk [vmem:[%s38] sm:$0x1] %vm37, %v36
    %v40 = vld [vmem:[#allocation0] sm:$0x1]
    %41 = vrot.lane.b32.xlu0 %v40, 104
    %v42 = vpop.permute.xlu0 %41
    %vm43 = vcmask 31744
    %s44 = scalar_lea.vmem %s1, 6
    %45 = vst.msk [vmem:[%s44] sm:$0x1] %vm43, %v42
    %v46 = vld [vmem:[#allocation0] sm:$0x1]
    %47 = vrot.lane.b32.xlu0 %v46, 100
    %v48 = vpop.permute.xlu0 %47
    %vm49 = vcmask 31744
    %s50 = scalar_lea.vmem %s1, 7
    %51 = vst.msk [vmem:[%s50] sm:$0x1] %vm49, %v48

// kernel: rtn_forward.1
$region0: #{rtn_forward.1}
  #allocation0 [shape = 'u32[]', space=smem, size = 0x4, offset = 0x4, fixed_abs, tag = 'smem constant byte address 0x4 - core index']
  #allocation1 [shape = 'u32[144,128]{1,0:T(1,128)}', space=vmem, size = 0x12000, scoped, tag = 'internal scratch']
  #allocation2 [shape = 'f32[8,8,128]{2,1,0:T(8,128)}', space=vmem, size = 0x8000, scoped, tag = 'scratch operand']
  %s0 = inlined_call_operand.vmem [shape: f32[8,8,128], index: 0, kind: input, shape index: {}]
  %s1 = inlined_call_operand.vmem [shape: f32[8,128], index: 1, kind: input, shape index: {}]
  %s2 = inlined_call_operand.vmem [shape: f32[128,128], index: 2, kind: input, shape index: {}]
  %s3 = inlined_call_operand.vmem [shape: f32[128,128], index: 3, kind: input, shape index: {}]
  %s4 = inlined_call_operand.vmem [shape: f32[1,128], index: 4, kind: input, shape index: {}]
  %s5 = inlined_call_operand.vmem [shape: f32[8,128], index: 5, kind: input, shape index: {}]
  %s6 = inlined_call_operand.vmem [shape: f32[8,4,128], index: 6, kind: input, shape index: {}]
  %s7 = inlined_call_operand.vmem [shape: f32[8,4,128], index: 7, kind: input, shape index: {}]
  %s8 = inlined_call_operand.vmem [shape: f32[8,4], index: 8, kind: input, shape index: {}]
  %s9 = inlined_call_operand.vmem [shape: f32[8,128], index: 9, kind: output, shape index: {0}]
  %s10 = inlined_call_operand.hbm [shape: f32[8,128], index: 10, kind: output, shape index: {1}]
  %11 = xla_tuple %s9, %s10
  %s12 = sld [smem:[#allocation0]]
  $region54: #{rtn_forward.1} parent=0
    _
  %s14 = ssub.s32 1, %s12
  %s15 = scalar_select 0, %s14, %s12
  $region1: #{rtn_forward.1} parent=0
    #allocation3 [shape = 'u8[4096]{0}', space=vmem, size = 0x1000, scoped, tag = 'output window, operand 1, single buffered']
    #allocation4 [shape = 's32[1]{0}', space=sflag, size = 0x4, scoped, tag = 'scoped memory for rtn_forward.1']
    %16 = vsyncpa [#allocation4], 0
    // Predicated region
    $region2: #{rtn_forward.1} parent=1 // pred_check
      _
    $region3: #{rtn_forward.1} parent=1 // pred_check_branch
      %18 = sbr.rel (0) target = $region5
    $region4: #{rtn_forward.1} parent=1 // pred_region
      _
    $region5: #{rtn_forward.1} parent=1 // pred_fallthru
      _
    // Predicated region
    $region6: #{rtn_forward.1} parent=1 // pred_check
      _
    $region7: #{rtn_forward.1} parent=1 // pred_check_branch
      %20 = sbr.rel (0) target = $region9
    $region8: #{rtn_forward.1} parent=1 // pred_region
      _
    $region9: #{rtn_forward.1} parent=1 // pred_fallthru
      _
    // Predicated region
    $region10: #{rtn_forward.1} parent=1 // pred_check
      _
    $region11: #{rtn_forward.1} parent=1 // pred_check_branch
      %22 = sbr.rel (0) target = $region13
    $region12: #{rtn_forward.1} parent=1 // pred_region
      _
    $region13: #{rtn_forward.1} parent=1 // pred_fallthru
      _
    // Predicated region
    $region14: #{rtn_forward.1} parent=1 // pred_check
      _
    $region15: #{rtn_forward.1} parent=1 // pred_check_branch
      %24 = sbr.rel (0) target = $region17
    $region16: #{rtn_forward.1} parent=1 // pred_region
      _
    $region17: #{rtn_forward.1} parent=1 // pred_fallthru
      _
    // Predicated region
    $region18: #{rtn_forward.1} parent=1 // pred_check
      _
    $region19: #{rtn_forward.1} parent=1 // pred_check_branch
      %26 = sbr.rel (0) target = $region21
    $region20: #{rtn_forward.1} parent=1 // pred_region
      _
    $region21: #{rtn_forward.1} parent=1 // pred_fallthru
      _
    // Predicated region
    $region22: #{rtn_forward.1} parent=1 // pred_check
      _
    $region23: #{rtn_forward.1} parent=1 // pred_check_branch
      %28 = sbr.rel (0) target = $region25
    $region24: #{rtn_forward.1} parent=1 // pred_region
      _
    $region25: #{rtn_forward.1} parent=1 // pred_fallthru
      _
    // Predicated region
    $region26: #{rtn_forward.1} parent=1 // pred_check
      _
    $region27: #{rtn_forward.1} parent=1 // pred_check_branch
      %30 = sbr.rel (0) target = $region29
    $region28: #{rtn_forward.1} parent=1 // pred_region
      _
    $region29: #{rtn_forward.1} parent=1 // pred_fallthru
      _
    // Predicated region
    $region30: #{rtn_forward.1} parent=1 // pred_check
      _
    $region31: #{rtn_forward.1} parent=1 // pred_check_branch
      %32 = sbr.rel (0) target = $region33
    $region32: #{rtn_forward.1} parent=1 // pred_region
      _
    $region33: #{rtn_forward.1} parent=1 // pred_fallthru
      _
    // Predicated region
    $region34: #{rtn_forward.1} parent=1 // pred_check
      _
    $region35: #{rtn_forward.1} parent=1 // pred_check_branch
      %34 = sbr.rel (0) target = $region37
    $region36: #{rtn_forward.1} parent=1 // pred_region
      _
    $region37: #{rtn_forward.1} parent=1 // pred_fallthru
      _
    %v35 = vld [vmem:[%s2] sm:$0xff]
    %v36 = vld [vmem:[%s2 + $0x8] sm:$0xff]
    %v37 = vld [vmem:[%s2 + $0x10] sm:$0xff]
    %v38 = vld [vmem:[%s2 + $0x18] sm:$0xff]
    %v39 = vld [vmem:[%s2 + $0x20] sm:$0xff]
    %v40 = vld [vmem:[%s2 + $0x28] sm:$0xff]
    %v41 = vld [vmem:[%s2 + $0x30] sm:$0xff]
    %v42 = vld [vmem:[%s2 + $0x38] sm:$0xff]
    %v43 = vld [vmem:[%s2 + $0x40] sm:$0xff]
    %v44 = vld [vmem:[%s2 + $0x48] sm:$0xff]
    %v45 = vld [vmem:[%s2 + $0x50] sm:$0xff]
    %v46 = vld [vmem:[%s2 + $0x58] sm:$0xff]
    %v47 = vld [vmem:[%s2 + $0x60] sm:$0xff]
    %v48 = vld [vmem:[%s2 + $0x68] sm:$0xff]
    %v49 = vld [vmem:[%s2 + $0x70] sm:$0xff]
    %v50 = vld [vmem:[%s2 + $0x78] sm:$0xff]
    %v51 = vld [vmem:[%s3] sm:$0xff]
    %v52 = vld [vmem:[%s3 + $0x8] sm:$0xff]
    %v53 = vld [vmem:[%s3 + $0x10] sm:$0xff]
    %v54 = vld [vmem:[%s3 + $0x18] sm:$0xff]
    %v55 = vld [vmem:[%s3 + $0x20] sm:$0xff]
    %v56 = vld [vmem:[%s3 + $0x28] sm:$0xff]
    %v57 = vld [vmem:[%s3 + $0x30] sm:$0xff]
    %v58 = vld [vmem:[%s3 + $0x38] sm:$0xff]
    %v59 = vld [vmem:[%s3 + $0x40] sm:$0xff]
    %v60 = vld [vmem:[%s3 + $0x48] sm:$0xff]
    %v61 = vld [vmem:[%s3 + $0x50] sm:$0xff]
    %v62 = vld [vmem:[%s3 + $0x58] sm:$0xff]
    %v63 = vld [vmem:[%s3 + $0x60] sm:$0xff]
    %v64 = vld [vmem:[%s3 + $0x68] sm:$0xff]
    %v65 = vld [vmem:[%s3 + $0x70] sm:$0xff]
    %v66 = vld [vmem:[%s3 + $0x78] sm:$0xff]
    %v67 = vld [vmem:[%s4] sm:$0x1]
    %v68 = vld [vmem:[%s0] sm:$0xff]
    %v69 = vld [vmem:[%s0 + $0x8] sm:$0xff]
    %v70 = vld [vmem:[%s0 + $0x10] sm:$0xff]
    %v71 = vld [vmem:[%s0 + $0x18] sm:$0xff]
    %v72 = vld [vmem:[%s0 + $0x20] sm:$0xff]
    %v73 = vld [vmem:[%s0 + $0x28] sm:$0xff]
    %v74 = vld [vmem:[%s0 + $0x30] sm:$0xff]
    %v75 = vld [vmem:[%s0 + $0x38] sm:$0xff]
    %v77 = vlaneseq
    %v78 = vshrl.u32 %v77, 7
    %v79 = vsub.s32 0, %v78
    %v80 = vrot.slane %v67, %v79
    %82 = vmatprep.subr.mxu0 0.0
    %83 = vmatpush1.msra.mxu0 %v50
    %84 = vmatprep.subr.mxu0 0.0
    %85 = vmatpush1.msra.mxu0 %v49
    %86 = vmatprep.subr.mxu0 0.0
    %87 = vmatpush1.msra.mxu0 %v48
    %88 = vmatprep.subr.mxu0 0.0
    %89 = vmatpush1.msra.mxu0 %v47
    %90 = vmatprep.subr.mxu0 0.0
    %91 = vmatpush1.msra.mxu0 %v46
    %92 = vmatprep.subr.mxu0 0.0
    %93 = vmatpush1.msra.mxu0 %v45
    %94 = vmatprep.subr.mxu0 0.0
    %95 = vmatpush1.msra.mxu0 %v44
    %96 = vmatprep.subr.mxu0 0.0
    %97 = vmatpush1.msra.mxu0 %v43
    %98 = vmatprep.subr.mxu0 0.0
    %99 = vmatpush1.msra.mxu0 %v42
    %100 = vmatprep.subr.mxu0 0.0
    %101 = vmatpush1.msra.mxu0 %v41
    %102 = vmatprep.subr.mxu0 0.0
    %103 = vmatpush1.msra.mxu0 %v40
    %104 = vmatprep.subr.mxu0 0.0
    %105 = vmatpush1.msra.mxu0 %v39
    %106 = vmatprep.subr.mxu0 0.0
    %107 = vmatpush1.msra.mxu0 %v38
    %108 = vmatprep.subr.mxu0 0.0
    %109 = vmatpush1.msra.mxu0 %v37
    %110 = vmatprep.subr.mxu0 0.0
    %111 = vmatpush1.msra.mxu0 %v36
    %112 = vmatprep.subr.mxu0 0.0
    %113 = vmatpush1.msra.mxu0 %v35
    %114 = vmatprep.subr.mxu0 0.0
    %115 = vmatpush2.msra.mxu0 0.0
    %116 = vmatprep.subr.mxu0 0.0
    %117 = vmatpush2.msra.mxu0 0.0
    %118 = vmatprep.subr.mxu0 0.0
    %119 = vmatpush2.msra.mxu0 0.0
    %120 = vmatprep.subr.mxu0 0.0
    %121 = vmatpush2.msra.mxu0 0.0
    %122 = vmatprep.subr.mxu0 0.0
    %123 = vmatpush2.msra.mxu0 0.0
    %124 = vmatprep.subr.mxu0 0.0
    %125 = vmatpush2.msra.mxu0 0.0
    %126 = vmatprep.subr.mxu0 0.0
    %127 = vmatpush2.msra.mxu0 0.0
    %128 = vmatprep.subr.mxu0 0.0
    %129 = vmatpush2.msra.mxu0 0.0
    %130 = vmatprep.subr.mxu0 0.0
    %131 = vmatpush2.msra.mxu0 0.0
    %132 = vmatprep.subr.mxu0 0.0
    %133 = vmatpush2.msra.mxu0 0.0
    %134 = vmatprep.subr.mxu0 0.0
    %135 = vmatpush2.msra.mxu0 0.0
    %136 = vmatprep.subr.mxu0 0.0
    %137 = vmatpush2.msra.mxu0 0.0
    %138 = vmatprep.subr.mxu0 0.0
    %139 = vmatpush2.msra.mxu0 0.0
    %140 = vmatprep.subr.mxu0 0.0
    %141 = vmatpush2.msra.mxu0 0.0
    %142 = vmatprep.subr.mxu0 0.0
    %143 = vmatpush2.msra.mxu0 0.0
    %144 = vmatprep.subr.mxu0 0.0
    %145 = vmatpush2.msra.mxu0 0.0
    %146 = vmatprep.mubr.f32.mxu0 0.0
    %147 = vmatmul.mubr.f32.gmra.mxu0 %v68
    %v148 = vpop.f32.mrf.mxu0
    %v149 = vadd.f32 %v80, %v148
    %v150 = vpop.f32.mrf.mxu0
    %151 = vmatprep.mubr.f32.mxu0 0.0
    %152 = vmatmul.mubr.f32.gmra.mxu0 %v69
    %v153 = vpop.f32.mrf.mxu0
    %v154 = vadd.f32 %v80, %v153
    %v155 = vpop.f32.mrf.mxu0
    %156 = vmatprep.mubr.f32.mxu0 0.0
    %157 = vmatmul.mubr.f32.gmra.mxu0 %v70
    %v158 = vpop.f32.mrf.mxu0
    %v159 = vadd.f32 %v80, %v158
    %v160 = vpop.f32.mrf.mxu0
    %161 = vmatprep.mubr.f32.mxu0 0.0
    %162 = vmatmul.mubr.f32.gmra.mxu0 %v71
    %v163 = vpop.f32.mrf.mxu0
    %v164 = vadd.f32 %v80, %v163
    %v165 = vpop.f32.mrf.mxu0
    %166 = vmatprep.mubr.f32.mxu0 0.0
    %167 = vmatmul.mubr.f32.gmra.mxu0 %v72
    %v168 = vpop.f32.mrf.mxu0
    %v169 = vadd.f32 %v80, %v168
    %v170 = vpop.f32.mrf.mxu0
    %171 = vmatprep.mubr.f32.mxu0 0.0
    %172 = vmatmul.mubr.f32.gmra.mxu0 %v73
    %v173 = vpop.f32.mrf.mxu0
    %v174 = vadd.f32 %v80, %v173
    %v175 = vpop.f32.mrf.mxu0
    %176 = vmatprep.mubr.f32.mxu0 0.0
    %177 = vmatmul.mubr.f32.gmra.mxu0 %v74
    %v178 = vpop.f32.mrf.mxu0
    %v179 = vadd.f32 %v80, %v178
    %v180 = vpop.f32.mrf.mxu0
    %181 = vmatprep.mubr.f32.mxu0 0.0
    %182 = vmatmul.mubr.f32.gmra.mxu0 %v75
    %v183 = vpop.f32.mrf.mxu0
    %v184 = vadd.f32 %v80, %v183
    %v185 = vpop.f32.mrf.mxu0
    %186 = vdwg.mxu0
    %187 = vst [vmem:[#allocation2] sm:$0xff] %v149
    %188 = vst [vmem:[#allocation2 + $0x8] sm:$0xff] %v154
    %189 = vst [vmem:[#allocation2 + $0x10] sm:$0xff] %v159
    %190 = vst [vmem:[#allocation2 + $0x18] sm:$0xff] %v164
    %191 = vst [vmem:[#allocation2 + $0x20] sm:$0xff] %v169
    %192 = vst [vmem:[#allocation2 + $0x28] sm:$0xff] %v174
    %193 = vst [vmem:[#allocation2 + $0x30] sm:$0xff] %v179
    %194 = vst [vmem:[#allocation2 + $0x38] sm:$0xff] %v184
    %v195 = vld [vmem:[%s1] sm:$0xff]
    %v196 = vld [vmem:[#allocation2] sm:$0xff]
    %197 = vmatprep.subr.mxu0 0.0
    %198 = vmatpush1.msra.mxu0 %v66
    %199 = vmatprep.subr.mxu0 0.0
    %200 = vmatpush1.msra.mxu0 %v65
    %201 = vmatprep.subr.mxu0 0.0
    %202 = vmatpush1.msra.mxu0 %v64
    %203 = vmatprep.subr.mxu0 0.0
    %204 = vmatpush1.msra.mxu0 %v63
    %205 = vmatprep.subr.mxu0 0.0
    %206 = vmatpush1.msra.mxu0 %v62
    %207 = vmatprep.subr.mxu0 0.0
    %208 = vmatpush1.msra.mxu0 %v61
    %209 = vmatprep.subr.mxu0 0.0
    %210 = vmatpush1.msra.mxu0 %v60
    %211 = vmatprep.subr.mxu0 0.0
    %212 = vmatpush1.msra.mxu0 %v59
    %213 = vmatprep.subr.mxu0 0.0
    %214 = vmatpush1.msra.mxu0 %v58
    %215 = vmatprep.subr.mxu0 0.0
    %216 = vmatpush1.msra.mxu0 %v57
    %217 = vmatprep.subr.mxu0 0.0
    %218 = vmatpush1.msra.mxu0 %v56
    %219 = vmatprep.subr.mxu0 0.0
    %220 = vmatpush1.msra.mxu0 %v55
    %221 = vmatprep.subr.mxu0 0.0
    %222 = vmatpush1.msra.mxu0 %v54
    %223 = vmatprep.subr.mxu0 0.0
    %224 = vmatpush1.msra.mxu0 %v53
    %225 = vmatprep.subr.mxu0 0.0
    %226 = vmatpush1.msra.mxu0 %v52
    %227 = vmatprep.subr.mxu0 0.0
    %228 = vmatpush1.msra.mxu0 %v51
    %229 = vmatprep.subr.mxu0 0.0
    %230 = vmatpush2.msra.mxu0 0.0
    %231 = vmatprep.subr.mxu0 0.0
    %232 = vmatpush2.msra.mxu0 0.0
    %233 = vmatprep.subr.mxu0 0.0
    %234 = vmatpush2.msra.mxu0 0.0
    %235 = vmatprep.subr.mxu0 0.0
    %236 = vmatpush2.msra.mxu0 0.0
    %237 = vmatprep.subr.mxu0 0.0
    %238 = vmatpush2.msra.mxu0 0.0
    %239 = vmatprep.subr.mxu0 0.0
    %240 = vmatpush2.msra.mxu0 0.0
    %241 = vmatprep.subr.mxu0 0.0
    %242 = vmatpush2.msra.mxu0 0.0
    %243 = vmatprep.subr.mxu0 0.0
    %244 = vmatpush2.msra.mxu0 0.0
    %245 = vmatprep.subr.mxu0 0.0
    %246 = vmatpush2.msra.mxu0 0.0
    %247 = vmatprep.subr.mxu0 0.0
    %248 = vmatpush2.msra.mxu0 0.0
    %249 = vmatprep.subr.mxu0 0.0
    %250 = vmatpush2.msra.mxu0 0.0
    %251 = vmatprep.subr.mxu0 0.0
    %252 = vmatpush2.msra.mxu0 0.0
    %253 = vmatprep.subr.mxu0 0.0
    %254 = vmatpush2.msra.mxu0 0.0
    %255 = vmatprep.subr.mxu0 0.0
    %256 = vmatpush2.msra.mxu0 0.0
    %257 = vmatprep.subr.mxu0 0.0
    %258 = vmatpush2.msra.mxu0 0.0
    %259 = vmatprep.subr.mxu0 0.0
    %260 = vmatpush2.msra.mxu0 0.0
    %261 = vmatprep.mubr.f32.mxu0 0.0
    %262 = vmatmul.mubr.f32.gmra.mxu0 %v195
    %v263 = vpop.f32.mrf.mxu0
    %v264 = vadd.f32 0.0, %v263
    %v265 = vpop.f32.mrf.mxu0
    %266 = vdwg.mxu0
    %v267 = vadd.f32 %v196, %v264
    %v268 = vtanh.pop %v267
    %s269 = scalar_lea.vmem [#allocation2], 8
    %v270 = vld [vmem:[%s269] sm:$0xff]
    %271 = vmatprep.subr.mxu0 0.0
    %272 = vmatpush1.msra.mxu0 %v66
    %273 = vmatprep.subr.mxu0 0.0
    %274 = vmatpush1.msra.mxu0 %v65
    %275 = vmatprep.subr.mxu0 0.0
    %276 = vmatpush1.msra.mxu0 %v64
    %277 = vmatprep.subr.mxu0 0.0
    %278 = vmatpush1.msra.mxu0 %v63
    %279 = vmatprep.subr.mxu0 0.0
    %280 = vmatpush1.msra.mxu0 %v62
    %281 = vmatprep.subr.mxu0 0.0
    %282 = vmatpush1.msra.mxu0 %v61
    %283 = vmatprep.subr.mxu0 0.0
    %284 = vmatpush1.msra.mxu0 %v60
    %285 = vmatprep.subr.mxu0 0.0
    %286 = vmatpush1.msra.mxu0 %v59
    %287 = vmatprep.subr.mxu0 0.0
    %288 = vmatpush1.msra.mxu0 %v58
    %289 = vmatprep.subr.mxu0 0.0
    %290 = vmatpush1.msra.mxu0 %v57
    %291 = vmatprep.subr.mxu0 0.0
    %292 = vmatpush1.msra.mxu0 %v56
    %293 = vmatprep.subr.mxu0 0.0
    %294 = vmatpush1.msra.mxu0 %v55
    %295 = vmatprep.subr.mxu0 0.0
    %296 = vmatpush1.msra.mxu0 %v54
    %297 = vmatprep.subr.mxu0 0.0
    %298 = vmatpush1.msra.mxu0 %v53
    %299 = vmatprep.subr.mxu0 0.0
    %300 = vmatpush1.msra.mxu0 %v52
    %301 = vmatprep.subr.mxu0 0.0
    %302 = vmatpush1.msra.mxu0 %v51
    %303 = vmatprep.subr.mxu0 0.0
    %304 = vmatpush2.msra.mxu0 0.0
    %305 = vmatprep.subr.mxu0 0.0
    %306 = vmatpush2.msra.mxu0 0.0
    %307 = vmatprep.subr.mxu0 0.0
    %308 = vmatpush2.msra.mxu0 0.0
    %309 = vmatprep.subr.mxu0 0.0
    %310 = vmatpush2.msra.mxu0 0.0
    %311 = vmatprep.subr.mxu0 0.0
    %312 = vmatpush2.msra.mxu0 0.0
    %313 = vmatprep.subr.mxu0 0.0
    %314 = vmatpush2.msra.mxu0 0.0
    %315 = vmatprep.subr.mxu0 0.0
    %316 = vmatpush2.msra.mxu0 0.0
    %317 = vmatprep.subr.mxu0 0.0
    %318 = vmatpush2.msra.mxu0 0.0
    %319 = vmatprep.subr.mxu0 0.0
    %320 = vmatpush2.msra.mxu0 0.0
    %321 = vmatprep.subr.mxu0 0.0
    %322 = vmatpush2.msra.mxu0 0.0
    %323 = vmatprep.subr.mxu0 0.0
    %324 = vmatpush2.msra.mxu0 0.0
    %325 = vmatprep.subr.mxu0 0.0
    %326 = vmatpush2.msra.mxu0 0.0
    %327 = vmatprep.subr.mxu0 0.0
    %328 = vmatpush2.msra.mxu0 0.0
    %329 = vmatprep.subr.mxu0 0.0
    %330 = vmatpush2.msra.mxu0 0.0
    %331 = vmatprep.subr.mxu0 0.0
    %332 = vmatpush2.msra.mxu0 0.0
    %333 = vmatprep.subr.mxu0 0.0
    %334 = vmatpush2.msra.mxu0 0.0
    %335 = vmatprep.mubr.f32.mxu0 0.0
    %336 = vmatmul.mubr.f32.gmra.mxu0 %v268
    %v337 = vpop.f32.mrf.mxu0
    %v338 = vadd.f32 0.0, %v337
    %v339 = vpop.f32.mrf.mxu0
    %340 = vdwg.mxu0
    %v341 = vadd.f32 %v270, %v338
    %v342 = vtanh.pop %v341
    %s343 = scalar_lea.vmem [#allocation2], 16
    %v344 = vld [vmem:[%s343] sm:$0xff]
    %345 = vmatprep.subr.mxu0 0.0
    %346 = vmatpush1.msra.mxu0 %v66
    %347 = vmatprep.subr.mxu0 0.0
    %348 = vmatpush1.msra.mxu0 %v65
    %349 = vmatprep.subr.mxu0 0.0
    %350 = vmatpush1.msra.mxu0 %v64
    %351 = vmatprep.subr.mxu0 0.0
    %352 = vmatpush1.msra.mxu0 %v63
    %353 = vmatprep.subr.mxu0 0.0
    %354 = vmatpush1.msra.mxu0 %v62
    %355 = vmatprep.subr.mxu0 0.0
    %356 = vmatpush1.msra.mxu0 %v61
    %357 = vmatprep.subr.mxu0 0.0
    %358 = vmatpush1.msra.mxu0 %v60
    %359 = vmatprep.subr.mxu0 0.0
    %360 = vmatpush1.msra.mxu0 %v59
    %361 = vmatprep.subr.mxu0 0.0
    %362 = vmatpush1.msra.mxu0 %v58
    %363 = vmatprep.subr.mxu0 0.0
    %364 = vmatpush1.msra.mxu0 %v57
    %365 = vmatprep.subr.mxu0 0.0
    %366 = vmatpush1.msra.mxu0 %v56
    %367 = vmatprep.subr.mxu0 0.0
    %368 = vmatpush1.msra.mxu0 %v55
    %369 = vmatprep.subr.mxu0 0.0
    %370 = vmatpush1.msra.mxu0 %v54
    %371 = vmatprep.subr.mxu0 0.0
    %372 = vmatpush1.msra.mxu0 %v53
    %373 = vmatprep.subr.mxu0 0.0
    %374 = vmatpush1.msra.mxu0 %v52
    %375 = vmatprep.subr.mxu0 0.0
    %376 = vmatpush1.msra.mxu0 %v51
    %377 = vmatprep.subr.mxu0 0.0
    %378 = vmatpush2.msra.mxu0 0.0
    %379 = vmatprep.subr.mxu0 0.0
    %380 = vmatpush2.msra.mxu0 0.0
    %381 = vmatprep.subr.mxu0 0.0
    %382 = vmatpush2.msra.mxu0 0.0
    %383 = vmatprep.subr.mxu0 0.0
    %384 = vmatpush2.msra.mxu0 0.0
    %385 = vmatprep.subr.mxu0 0.0
    %386 = vmatpush2.msra.mxu0 0.0
    %387 = vmatprep.subr.mxu0 0.0
    %388 = vmatpush2.msra.mxu0 0.0
    %389 = vmatprep.subr.mxu0 0.0
    %390 = vmatpush2.msra.mxu0 0.0
    %391 = vmatprep.subr.mxu0 0.0
    %392 = vmatpush2.msra.mxu0 0.0
    %393 = vmatprep.subr.mxu0 0.0
    %394 = vmatpush2.msra.mxu0 0.0
    %395 = vmatprep.subr.mxu0 0.0
    %396 = vmatpush2.msra.mxu0 0.0
    %397 = vmatprep.subr.mxu0 0.0
    %398 = vmatpush2.msra.mxu0 0.0
    %399 = vmatprep.subr.mxu0 0.0
    %400 = vmatpush2.msra.mxu0 0.0
    %401 = vmatprep.subr.mxu0 0.0
    %402 = vmatpush2.msra.mxu0 0.0
    %403 = vmatprep.subr.mxu0 0.0
    %404 = vmatpush2.msra.mxu0 0.0
    %405 = vmatprep.subr.mxu0 0.0
    %406 = vmatpush2.msra.mxu0 0.0
    %407 = vmatprep.subr.mxu0 0.0
    %408 = vmatpush2.msra.mxu0 0.0
    %409 = vmatprep.mubr.f32.mxu0 0.0
    %410 = vmatmul.mubr.f32.gmra.mxu0 %v342
    %v411 = vpop.f32.mrf.mxu0
    %v412 = vadd.f32 0.0, %v411
    %v413 = vpop.f32.mrf.mxu0
    %414 = vdwg.mxu0
    %v415 = vadd.f32 %v344, %v412
    %v416 = vtanh.pop %v415
    %s417 = scalar_lea.vmem [#allocation2], 24
    %v418 = vld [vmem:[%s417] sm:$0xff]
    %419 = vmatprep.subr.mxu0 0.0
    %420 = vmatpush1.msra.mxu0 %v66
    %421 = vmatprep.subr.mxu0 0.0
    %422 = vmatpush1.msra.mxu0 %v65
    %423 = vmatprep.subr.mxu0 0.0
    %424 = vmatpush1.msra.mxu0 %v64
    %425 = vmatprep.subr.mxu0 0.0
    %426 = vmatpush1.msra.mxu0 %v63
    %427 = vmatprep.subr.mxu0 0.0
    %428 = vmatpush1.msra.mxu0 %v62
    %429 = vmatprep.subr.mxu0 0.0
    %430 = vmatpush1.msra.mxu0 %v61
    %431 = vmatprep.subr.mxu0 0.0
    %432 = vmatpush1.msra.mxu0 %v60
    %433 = vmatprep.subr.mxu0 0.0
    %434 = vmatpush1.msra.mxu0 %v59
    %435 = vmatprep.subr.mxu0 0.0
    %436 = vmatpush1.msra.mxu0 %v58
    %437 = vmatprep.subr.mxu0 0.0
    %438 = vmatpush1.msra.mxu0 %v57
    %439 = vmatprep.subr.mxu0 0.0
    %440 = vmatpush1.msra.mxu0 %v56
    %441 = vmatprep.subr.mxu0 0.0
    %442 = vmatpush1.msra.mxu0 %v55
    %443 = vmatprep.subr.mxu0 0.0
    %444 = vmatpush1.msra.mxu0 %v54
    %445 = vmatprep.subr.mxu0 0.0
    %446 = vmatpush1.msra.mxu0 %v53
    %447 = vmatprep.subr.mxu0 0.0
    %448 = vmatpush1.msra.mxu0 %v52
    %449 = vmatprep.subr.mxu0 0.0
    %450 = vmatpush1.msra.mxu0 %v51
    %451 = vmatprep.subr.mxu0 0.0
    %452 = vmatpush2.msra.mxu0 0.0
    %453 = vmatprep.subr.mxu0 0.0
    %454 = vmatpush2.msra.mxu0 0.0
    %455 = vmatprep.subr.mxu0 0.0
    %456 = vmatpush2.msra.mxu0 0.0
    %457 = vmatprep.subr.mxu0 0.0
    %458 = vmatpush2.msra.mxu0 0.0
    %459 = vmatprep.subr.mxu0 0.0
    %460 = vmatpush2.msra.mxu0 0.0
    %461 = vmatprep.subr.mxu0 0.0
    %462 = vmatpush2.msra.mxu0 0.0
    %463 = vmatprep.subr.mxu0 0.0
    %464 = vmatpush2.msra.mxu0 0.0
    %465 = vmatprep.subr.mxu0 0.0
    %466 = vmatpush2.msra.mxu0 0.0
    %467 = vmatprep.subr.mxu0 0.0
    %468 = vmatpush2.msra.mxu0 0.0
    %469 = vmatprep.subr.mxu0 0.0
    %470 = vmatpush2.msra.mxu0 0.0
    %471 = vmatprep.subr.mxu0 0.0
    %472 = vmatpush2.msra.mxu0 0.0
    %473 = vmatprep.subr.mxu0 0.0
    %474 = vmatpush2.msra.mxu0 0.0
    %475 = vmatprep.subr.mxu0 0.0
    %476 = vmatpush2.msra.mxu0 0.0
    %477 = vmatprep.subr.mxu0 0.0
    %478 = vmatpush2.msra.mxu0 0.0
    %479 = vmatprep.subr.mxu0 0.0
    %480 = vmatpush2.msra.mxu0 0.0
    %481 = vmatprep.subr.mxu0 0.0
    %482 = vmatpush2.msra.mxu0 0.0
    %483 = vmatprep.mubr.f32.mxu0 0.0
    %484 = vmatmul.mubr.f32.gmra.mxu0 %v416
    %v485 = vpop.f32.mrf.mxu0
    %v486 = vadd.f32 0.0, %v485
    %v487 = vpop.f32.mrf.mxu0
    %488 = vdwg.mxu0
    %v489 = vadd.f32 %v418, %v486
    %v490 = vtanh.pop %v489
    %s491 = scalar_lea.vmem [#allocation2], 32
    %v492 = vld [vmem:[%s491] sm:$0xff]
    %493 = vmatprep.subr.mxu0 0.0
    %494 = vmatpush1.msra.mxu0 %v66
    %495 = vmatprep.subr.mxu0 0.0
    %496 = vmatpush1.msra.mxu0 %v65
    %497 = vmatprep.subr.mxu0 0.0
    %498 = vmatpush1.msra.mxu0 %v64
    %499 = vmatprep.subr.mxu0 0.0
    %500 = vmatpush1.msra.mxu0 %v63
    %501 = vmatprep.subr.mxu0 0.0
    %502 = vmatpush1.msra.mxu0 %v62
    %503 = vmatprep.subr.mxu0 0.0
    %504 = vmatpush1.msra.mxu0 %v61
    %505 = vmatprep.subr.mxu0 0.0
    %506 = vmatpush1.msra.mxu0 %v60
    %507 = vmatprep.subr.mxu0 0.0
    %508 = vmatpush1.msra.mxu0 %v59
    %509 = vmatprep.subr.mxu0 0.0
    %510 = vmatpush1.msra.mxu0 %v58
    %511 = vmatprep.subr.mxu0 0.0
    %512 = vmatpush1.msra.mxu0 %v57
    %513 = vmatprep.subr.mxu0 0.0
    %514 = vmatpush1.msra.mxu0 %v56
    %515 = vmatprep.subr.mxu0 0.0
    %516 = vmatpush1.msra.mxu0 %v55
    %517 = vmatprep.subr.mxu0 0.0
    %518 = vmatpush1.msra.mxu0 %v54
    %519 = vmatprep.subr.mxu0 0.0
    %520 = vmatpush1.msra.mxu0 %v53
    %521 = vmatprep.subr.mxu0 0.0
    %522 = vmatpush1.msra.mxu0 %v52
    %523 = vmatprep.subr.mxu0 0.0
    %524 = vmatpush1.msra.mxu0 %v51
    %525 = vmatprep.subr.mxu0 0.0
    %526 = vmatpush2.msra.mxu0 0.0
    %527 = vmatprep.subr.mxu0 0.0
    %528 = vmatpush2.msra.mxu0 0.0
    %529 = vmatprep.subr.mxu0 0.0
    %530 = vmatpush2.msra.mxu0 0.0
    %531 = vmatprep.subr.mxu0 0.0
    %532 = vmatpush2.msra.mxu0 0.0
    %533 = vmatprep.subr.mxu0 0.0
    %534 = vmatpush2.msra.mxu0 0.0
    %535 = vmatprep.subr.mxu0 0.0
    %536 = vmatpush2.msra.mxu0 0.0
    %537 = vmatprep.subr.mxu0 0.0
    %538 = vmatpush2.msra.mxu0 0.0
    %539 = vmatprep.subr.mxu0 0.0
    %540 = vmatpush2.msra.mxu0 0.0
    %541 = vmatprep.subr.mxu0 0.0
    %542 = vmatpush2.msra.mxu0 0.0
    %543 = vmatprep.subr.mxu0 0.0
    %544 = vmatpush2.msra.mxu0 0.0
    %545 = vmatprep.subr.mxu0 0.0
    %546 = vmatpush2.msra.mxu0 0.0
    %547 = vmatprep.subr.mxu0 0.0
    %548 = vmatpush2.msra.mxu0 0.0
    %549 = vmatprep.subr.mxu0 0.0
    %550 = vmatpush2.msra.mxu0 0.0
    %551 = vmatprep.subr.mxu0 0.0
    %552 = vmatpush2.msra.mxu0 0.0
    %553 = vmatprep.subr.mxu0 0.0
    %554 = vmatpush2.msra.mxu0 0.0
    %555 = vmatprep.subr.mxu0 0.0
    %556 = vmatpush2.msra.mxu0 0.0
    %557 = vmatprep.mubr.f32.mxu0 0.0
    %558 = vmatmul.mubr.f32.gmra.mxu0 %v490
    %v559 = vpop.f32.mrf.mxu0
    %v560 = vadd.f32 0.0, %v559
    %v561 = vpop.f32.mrf.mxu0
    %562 = vdwg.mxu0
    %v563 = vadd.f32 %v492, %v560
    %v564 = vtanh.pop %v563
    %s565 = scalar_lea.vmem [#allocation2], 40
    %v566 = vld [vmem:[%s565] sm:$0xff]
    %567 = vmatprep.subr.mxu0 0.0
    %568 = vmatpush1.msra.mxu0 %v66
    %569 = vmatprep.subr.mxu0 0.0
    %570 = vmatpush1.msra.mxu0 %v65
    %571 = vmatprep.subr.mxu0 0.0
    %572 = vmatpush1.msra.mxu0 %v64
    %573 = vmatprep.subr.mxu0 0.0
    %574 = vmatpush1.msra.mxu0 %v63
    %575 = vmatprep.subr.mxu0 0.0
    %576 = vmatpush1.msra.mxu0 %v62
    %577 = vmatprep.subr.mxu0 0.0
    %578 = vmatpush1.msra.mxu0 %v61
    %579 = vmatprep.subr.mxu0 0.0
    %580 = vmatpush1.msra.mxu0 %v60
    %581 = vmatprep.subr.mxu0 0.0
    %582 = vmatpush1.msra.mxu0 %v59
    %583 = vmatprep.subr.mxu0 0.0
    %584 = vmatpush1.msra.mxu0 %v58
    %585 = vmatprep.subr.mxu0 0.0
    %586 = vmatpush1.msra.mxu0 %v57
    %587 = vmatprep.subr.mxu0 0.0
    %588 = vmatpush1.msra.mxu0 %v56
    %589 = vmatprep.subr.mxu0 0.0
    %590 = vmatpush1.msra.mxu0 %v55
    %591 = vmatprep.subr.mxu0 0.0
    %592 = vmatpush1.msra.mxu0 %v54
    %593 = vmatprep.subr.mxu0 0.0
    %594 = vmatpush1.msra.mxu0 %v53
    %595 = vmatprep.subr.mxu0 0.0
    %596 = vmatpush1.msra.mxu0 %v52
    %597 = vmatprep.subr.mxu0 0.0
    %598 = vmatpush1.msra.mxu0 %v51
    %599 = vmatprep.subr.mxu0 0.0
    %600 = vmatpush2.msra.mxu0 0.0
    %601 = vmatprep.subr.mxu0 0.0
    %602 = vmatpush2.msra.mxu0 0.0
    %603 = vmatprep.subr.mxu0 0.0
    %604 = vmatpush2.msra.mxu0 0.0
    %605 = vmatprep.subr.mxu0 0.0
    %606 = vmatpush2.msra.mxu0 0.0
    %607 = vmatprep.subr.mxu0 0.0
    %608 = vmatpush2.msra.mxu0 0.0
    %609 = vmatprep.subr.mxu0 0.0
    %610 = vmatpush2.msra.mxu0 0.0
    %611 = vmatprep.subr.mxu0 0.0
    %612 = vmatpush2.msra.mxu0 0.0
    %613 = vmatprep.subr.mxu0 0.0
    %614 = vmatpush2.msra.mxu0 0.0
    %615 = vmatprep.subr.mxu0 0.0
    %616 = vmatpush2.msra.mxu0 0.0
    %617 = vmatprep.subr.mxu0 0.0
    %618 = vmatpush2.msra.mxu0 0.0
    %619 = vmatprep.subr.mxu0 0.0
    %620 = vmatpush2.msra.mxu0 0.0
    %621 = vmatprep.subr.mxu0 0.0
    %622 = vmatpush2.msra.mxu0 0.0
    %623 = vmatprep.subr.mxu0 0.0
    %624 = vmatpush2.msra.mxu0 0.0
    %625 = vmatprep.subr.mxu0 0.0
    %626 = vmatpush2.msra.mxu0 0.0
    %627 = vmatprep.subr.mxu0 0.0
    %628 = vmatpush2.msra.mxu0 0.0
    %629 = vmatprep.subr.mxu0 0.0
    %630 = vmatpush2.msra.mxu0 0.0
    %631 = vmatprep.mubr.f32.mxu0 0.0
    %632 = vmatmul.mubr.f32.gmra.mxu0 %v564
    %v633 = vpop.f32.mrf.mxu0
    %v634 = vadd.f32 0.0, %v633
    %v635 = vpop.f32.mrf.mxu0
    %636 = vdwg.mxu0
    %v637 = vadd.f32 %v566, %v634
    %v638 = vtanh.pop %v637
    %s639 = scalar_lea.vmem [#allocation2], 48
    %v640 = vld [vmem:[%s639] sm:$0xff]
    %641 = vmatprep.subr.mxu0 0.0
    %642 = vmatpush1.msra.mxu0 %v66
    %643 = vmatprep.subr.mxu0 0.0
    %644 = vmatpush1.msra.mxu0 %v65
    %645 = vmatprep.subr.mxu0 0.0
    %646 = vmatpush1.msra.mxu0 %v64
    %647 = vmatprep.subr.mxu0 0.0
    %648 = vmatpush1.msra.mxu0 %v63
    %649 = vmatprep.subr.mxu0 0.0
    %650 = vmatpush1.msra.mxu0 %v62
    %651 = vmatprep.subr.mxu0 0.0
    %652 = vmatpush1.msra.mxu0 %v61
    %653 = vmatprep.subr.mxu0 0.0
    %654 = vmatpush1.msra.mxu0 %v60
    %655 = vmatprep.subr.mxu0 0.0
    %656 = vmatpush1.msra.mxu0 %v59
    %657 = vmatprep.subr.mxu0 0.0
    %658 = vmatpush1.msra.mxu0 %v58
    %659 = vmatprep.subr.mxu0 0.0
    %660 = vmatpush1.msra.mxu0 %v57
    %661 = vmatprep.subr.mxu0 0.0
    %662 = vmatpush1.msra.mxu0 %v56
    %663 = vmatprep.subr.mxu0 0.0
    %664 = vmatpush1.msra.mxu0 %v55
    %665 = vmatprep.subr.mxu0 0.0
    %666 = vmatpush1.msra.mxu0 %v54
    %667 = vmatprep.subr.mxu0 0.0
    %668 = vmatpush1.msra.mxu0 %v53
    %669 = vmatprep.subr.mxu0 0.0
    %670 = vmatpush1.msra.mxu0 %v52
    %671 = vmatprep.subr.mxu0 0.0
    %672 = vmatpush1.msra.mxu0 %v51
    %673 = vmatprep.subr.mxu0 0.0
    %674 = vmatpush2.msra.mxu0 0.0
    %675 = vmatprep.subr.mxu0 0.0
    %676 = vmatpush2.msra.mxu0 0.0
    %677 = vmatprep.subr.mxu0 0.0
    %678 = vmatpush2.msra.mxu0 0.0
    %679 = vmatprep.subr.mxu0 0.0
    %680 = vmatpush2.msra.mxu0 0.0
    %681 = vmatprep.subr.mxu0 0.0
    %682 = vmatpush2.msra.mxu0 0.0
    %683 = vmatprep.subr.mxu0 0.0
    %684 = vmatpush2.msra.mxu0 0.0
    %685 = vmatprep.subr.mxu0 0.0
    %686 = vmatpush2.msra.mxu0 0.0
    %687 = vmatprep.subr.mxu0 0.0
    %688 = vmatpush2.msra.mxu0 0.0
    %689 = vmatprep.subr.mxu0 0.0
    %690 = vmatpush2.msra.mxu0 0.0
    %691 = vmatprep.subr.mxu0 0.0
    %692 = vmatpush2.msra.mxu0 0.0
    %693 = vmatprep.subr.mxu0 0.0
    %694 = vmatpush2.msra.mxu0 0.0
    %695 = vmatprep.subr.mxu0 0.0
    %696 = vmatpush2.msra.mxu0 0.0
    %697 = vmatprep.subr.mxu0 0.0
    %698 = vmatpush2.msra.mxu0 0.0
    %699 = vmatprep.subr.mxu0 0.0
    %700 = vmatpush2.msra.mxu0 0.0
    %701 = vmatprep.subr.mxu0 0.0
    %702 = vmatpush2.msra.mxu0 0.0
    %703 = vmatprep.subr.mxu0 0.0
    %704 = vmatpush2.msra.mxu0 0.0
    %705 = vmatprep.mubr.f32.mxu0 0.0
    %706 = vmatmul.mubr.f32.gmra.mxu0 %v638
    %v707 = vpop.f32.mrf.mxu0
    %v708 = vadd.f32 0.0, %v707
    %v709 = vpop.f32.mrf.mxu0
    %710 = vdwg.mxu0
    %v711 = vadd.f32 %v640, %v708
    %v712 = vtanh.pop %v711
    %s713 = scalar_lea.vmem [#allocation2], 56
    %v714 = vld [vmem:[%s713] sm:$0xff]
    %715 = vmatprep.subr.mxu0 0.0
    %716 = vmatpush1.msra.mxu0 %v66
    %717 = vmatprep.subr.mxu0 0.0
    %718 = vmatpush1.msra.mxu0 %v65
    %719 = vmatprep.subr.mxu0 0.0
    %720 = vmatpush1.msra.mxu0 %v64
    %721 = vmatprep.subr.mxu0 0.0
    %722 = vmatpush1.msra.mxu0 %v63
    %723 = vmatprep.subr.mxu0 0.0
    %724 = vmatpush1.msra.mxu0 %v62
    %725 = vmatprep.subr.mxu0 0.0
    %726 = vmatpush1.msra.mxu0 %v61
    %727 = vmatprep.subr.mxu0 0.0
    %728 = vmatpush1.msra.mxu0 %v60
    %729 = vmatprep.subr.mxu0 0.0
    %730 = vmatpush1.msra.mxu0 %v59
    %731 = vmatprep.subr.mxu0 0.0
    %732 = vmatpush1.msra.mxu0 %v58
    %733 = vmatprep.subr.mxu0 0.0
    %734 = vmatpush1.msra.mxu0 %v57
    %735 = vmatprep.subr.mxu0 0.0
    %736 = vmatpush1.msra.mxu0 %v56
    %737 = vmatprep.subr.mxu0 0.0
    %738 = vmatpush1.msra.mxu0 %v55
    %739 = vmatprep.subr.mxu0 0.0
    %740 = vmatpush1.msra.mxu0 %v54
    %741 = vmatprep.subr.mxu0 0.0
    %742 = vmatpush1.msra.mxu0 %v53
    %743 = vmatprep.subr.mxu0 0.0
    %744 = vmatpush1.msra.mxu0 %v52
    %745 = vmatprep.subr.mxu0 0.0
    %746 = vmatpush1.msra.mxu0 %v51
    %747 = vmatprep.subr.mxu0 0.0
    %748 = vmatpush2.msra.mxu0 0.0
    %749 = vmatprep.subr.mxu0 0.0
    %750 = vmatpush2.msra.mxu0 0.0
    %751 = vmatprep.subr.mxu0 0.0
    %752 = vmatpush2.msra.mxu0 0.0
    %753 = vmatprep.subr.mxu0 0.0
    %754 = vmatpush2.msra.mxu0 0.0
    %755 = vmatprep.subr.mxu0 0.0
    %756 = vmatpush2.msra.mxu0 0.0
    %757 = vmatprep.subr.mxu0 0.0
    %758 = vmatpush2.msra.mxu0 0.0
    %759 = vmatprep.subr.mxu0 0.0
    %760 = vmatpush2.msra.mxu0 0.0
    %761 = vmatprep.subr.mxu0 0.0
    %762 = vmatpush2.msra.mxu0 0.0
    %763 = vmatprep.subr.mxu0 0.0
    %764 = vmatpush2.msra.mxu0 0.0
    %765 = vmatprep.subr.mxu0 0.0
    %766 = vmatpush2.msra.mxu0 0.0
    %767 = vmatprep.subr.mxu0 0.0
    %768 = vmatpush2.msra.mxu0 0.0
    %769 = vmatprep.subr.mxu0 0.0
    %770 = vmatpush2.msra.mxu0 0.0
    %771 = vmatprep.subr.mxu0 0.0
    %772 = vmatpush2.msra.mxu0 0.0
    %773 = vmatprep.subr.mxu0 0.0
    %774 = vmatpush2.msra.mxu0 0.0
    %775 = vmatprep.subr.mxu0 0.0
    %776 = vmatpush2.msra.mxu0 0.0
    %777 = vmatprep.subr.mxu0 0.0
    %778 = vmatpush2.msra.mxu0 0.0
    %779 = vmatprep.mubr.f32.mxu0 0.0
    %780 = vmatmul.mubr.f32.gmra.mxu0 %v712
    %v781 = vpop.f32.mrf.mxu0
    %v782 = vadd.f32 0.0, %v781
    %v783 = vpop.f32.mrf.mxu0
    %784 = vdwg.mxu0
    %v785 = vadd.f32 %v714, %v782
    %v786 = vtanh.pop %v785
    %787 = vst [vmem:[#allocation3] sm:$0xff] %v786
    %v788 = vld [vmem:[%s5] sm:$0xff]
    %v789 = vld [vmem:[%s6] sm:$0xf]
    %v790 = vld [vmem:[%s6 + $0x4] sm:$0xf]
    %v791 = vld [vmem:[%s6 + $0x8] sm:$0xf]
    %v792 = vld [vmem:[%s6 + $0xc] sm:$0xf]
    %v793 = vld [vmem:[%s6 + $0x10] sm:$0xf]
    %v794 = vld [vmem:[%s6 + $0x14] sm:$0xf]
    %v795 = vld [vmem:[%s6 + $0x18] sm:$0xf]
    %v796 = vld [vmem:[%s6 + $0x1c] sm:$0xf]
    %v797 = vmul.f32 %v788, %v788
    %798 = vadd.xlane.f32.xlu0 %v797
    %v799 = vpop.xlane.xlu0 %798
    %v800 = vmul.f32 %v789, %v789
    %v801 = vmul.f32 %v790, %v790
    %v802 = vmul.f32 %v791, %v791
    %v803 = vmul.f32 %v792, %v792
    %v804 = vmul.f32 %v793, %v793
    %v805 = vmul.f32 %v794, %v794
    %v806 = vmul.f32 %v795, %v795
    %v807 = vmul.f32 %v796, %v796
    %vm808 = vcmask 1043456
    %v809 = vsel %vm808, %v800, 0.0
    %810 = vadd.xlane.f32.xlu0 %v809
    %v811 = vpop.xlane.xlu0 %810
    %v812 = vsel %vm808, %v801, 0.0
    %813 = vadd.xlane.f32.xlu0 %v812
    %v814 = vpop.xlane.xlu0 %813
    %v815 = vsel %vm808, %v802, 0.0
    %816 = vadd.xlane.f32.xlu0 %v815
    %v817 = vpop.xlane.xlu0 %816
    %v818 = vsel %vm808, %v803, 0.0
    %819 = vadd.xlane.f32.xlu0 %v818
    %v820 = vpop.xlane.xlu0 %819
    %v821 = vsel %vm808, %v804, 0.0
    %822 = vadd.xlane.f32.xlu0 %v821
    %v823 = vpop.xlane.xlu0 %822
    %v824 = vsel %vm808, %v805, 0.0
    %825 = vadd.xlane.f32.xlu0 %v824
    %v826 = vpop.xlane.xlu0 %825
    %v827 = vsel %vm808, %v806, 0.0
    %828 = vadd.xlane.f32.xlu0 %v827
    %v829 = vpop.xlane.xlu0 %828
    %v830 = vsel %vm808, %v807, 0.0
    %831 = vadd.xlane.f32.xlu0 %v830
    %v832 = vpop.xlane.xlu0 %831
    %v834 = vcombine.high %v788, %v788
    %v836 = vunpack.c.l.s4 1966171168
    %v837 = vunpack.c.0.s8 %v836
    %v838 = vlaneseq
    %v839 = vshrl.u32 %v838, 7
    %v840 = vsub.s32 %v837, %v839
    %v841 = vrot.slane %v788, %v840
    %v843 = vunpack.c.l.s4 1966171168
    %v844 = vunpack.c.0.s8 %v843
    %v845 = vlaneseq
    %v846 = vshrl.u32 %v845, 7
    %v847 = vsub.s32 %v844, %v846
    %v848 = vrot.slane %v834, %v847
    %v849 = vcombine.high %v841, %v841
    %v850 = vcombine.high %v848, %v848
    %v852 = vunpack.c.l.s4 1966171168
    %v853 = vunpack.c.0.s8 %v852
    %v854 = vlaneseq
    %v855 = vshrl.u32 %v854, 7
    %v856 = vsub.s32 %v853, %v855
    %v857 = vrot.slane %v841, %v856
    %v859 = vunpack.c.l.s4 1966171168
    %v860 = vunpack.c.0.s8 %v859
    %v861 = vlaneseq
    %v862 = vshrl.u32 %v861, 7
    %v863 = vsub.s32 %v860, %v862
    %v864 = vrot.slane %v848, %v863
    %v866 = vunpack.c.l.s4 1966171168
    %v867 = vunpack.c.0.s8 %v866
    %v868 = vlaneseq
    %v869 = vshrl.u32 %v868, 7
    %v870 = vsub.s32 %v867, %v869
    %v871 = vrot.slane %v849, %v870
    %v873 = vunpack.c.l.s4 1966171168
    %v874 = vunpack.c.0.s8 %v873
    %v875 = vlaneseq
    %v876 = vshrl.u32 %v875, 7
    %v877 = vsub.s32 %v874, %v876
    %v878 = vrot.slane %v850, %v877
    %v879 = vcombine.high %v857, %v857
    %v880 = vcombine.high %v864, %v864
    %v881 = vcombine.high %v871, %v871
    %v882 = vcombine.high %v878, %v878
    %891 = vmatprep.subr.mxu0 0.0
    %892 = vmatpush1.xpose.msra.mxu0 0.0
    %893 = vmatprep.subr.mxu0 0.0
    %894 = vmatpush1.xpose.msra.mxu0 0.0
    %895 = vmatprep.subr.mxu0 0.0
    %896 = vmatpush1.xpose.msra.mxu0 0.0
    %897 = vmatprep.subr.mxu0 0.0
    %898 = vmatpush1.xpose.msra.mxu0 0.0
    %899 = vmatprep.subr.mxu0 0.0
    %900 = vmatpush1.xpose.msra.mxu0 0.0
    %901 = vmatprep.subr.mxu0 0.0
    %902 = vmatpush1.xpose.msra.mxu0 0.0
    %903 = vmatprep.subr.mxu0 0.0
    %904 = vmatpush1.xpose.msra.mxu0 0.0
    %905 = vmatprep.subr.mxu0 0.0
    %906 = vmatpush1.xpose.msra.mxu0 0.0
    %907 = vmatprep.subr.mxu0 0.0
    %908 = vmatpush1.xpose.msra.mxu0 0.0
    %909 = vmatprep.subr.mxu0 0.0
    %910 = vmatpush1.xpose.msra.mxu0 0.0
    %911 = vmatprep.subr.mxu0 0.0
    %912 = vmatpush1.xpose.msra.mxu0 0.0
    %913 = vmatprep.subr.mxu0 0.0
    %914 = vmatpush1.xpose.msra.mxu0 0.0
    %915 = vmatprep.subr.mxu0 0.0
    %916 = vmatpush1.xpose.msra.mxu0 0.0
    %917 = vmatprep.subr.mxu0 0.0
    %918 = vmatpush1.xpose.msra.mxu0 0.0
    %919 = vmatprep.subr.mxu0 0.0
    %920 = vmatpush1.xpose.msra.mxu0 0.0
    %921 = vmatprep.subr.mxu0 0.0
    %922 = vmatpush1.xpose.msra.mxu0 %v789
    %923 = vmatprep.subr.mxu0 0.0
    %924 = vmatpush2.xpose.msra.mxu0 0.0
    %925 = vmatprep.subr.mxu0 0.0
    %926 = vmatpush2.xpose.msra.mxu0 0.0
    %927 = vmatprep.subr.mxu0 0.0
    %928 = vmatpush2.xpose.msra.mxu0 0.0
    %929 = vmatprep.subr.mxu0 0.0
    %930 = vmatpush2.xpose.msra.mxu0 0.0
    %931 = vmatprep.subr.mxu0 0.0
    %932 = vmatpush2.xpose.msra.mxu0 0.0
    %933 = vmatprep.subr.mxu0 0.0
    %934 = vmatpush2.xpose.msra.mxu0 0.0
    %935 = vmatprep.subr.mxu0 0.0
    %936 = vmatpush2.xpose.msra.mxu0 0.0
    %937 = vmatprep.subr.mxu0 0.0
    %938 = vmatpush2.xpose.msra.mxu0 0.0
    %939 = vmatprep.subr.mxu0 0.0
    %940 = vmatpush2.xpose.msra.mxu0 0.0
    %941 = vmatprep.subr.mxu0 0.0
    %942 = vmatpush2.xpose.msra.mxu0 0.0
    %943 = vmatprep.subr.mxu0 0.0
    %944 = vmatpush2.xpose.msra.mxu0 0.0
    %945 = vmatprep.subr.mxu0 0.0
    %946 = vmatpush2.xpose.msra.mxu0 0.0
    %947 = vmatprep.subr.mxu0 0.0
    %948 = vmatpush2.xpose.msra.mxu0 0.0
    %949 = vmatprep.subr.mxu0 0.0
    %950 = vmatpush2.xpose.msra.mxu0 0.0
    %951 = vmatprep.subr.mxu0 0.0
    %952 = vmatpush2.xpose.msra.mxu0 0.0
    %953 = vmatprep.subr.mxu0 0.0
    %954 = vmatpush2.xpose.msra.mxu0 0.0
    %955 = vmatprep.mubr.f32.mxu0 0.0
    %956 = vmatmul.mubr.f32.gmra.mxu0 %v857
    %v957 = vpop.f32.mrf.mxu0
    %v958 = vadd.f32 0.0, %v957
    %v959 = vpop.f32.mrf.mxu0
    %960 = vdwg.mxu0
    %961 = vmatprep.subr.mxu0 0.0
    %962 = vmatpush1.xpose.msra.mxu0 0.0
    %963 = vmatprep.subr.mxu0 0.0
    %964 = vmatpush1.xpose.msra.mxu0 0.0
    %965 = vmatprep.subr.mxu0 0.0
    %966 = vmatpush1.xpose.msra.mxu0 0.0
    %967 = vmatprep.subr.mxu0 0.0
    %968 = vmatpush1.xpose.msra.mxu0 0.0
    %969 = vmatprep.subr.mxu0 0.0
    %970 = vmatpush1.xpose.msra.mxu0 0.0
    %971 = vmatprep.subr.mxu0 0.0
    %972 = vmatpush1.xpose.msra.mxu0 0.0
    %973 = vmatprep.subr.mxu0 0.0
    %974 = vmatpush1.xpose.msra.mxu0 0.0
    %975 = vmatprep.subr.mxu0 0.0
    %976 = vmatpush1.xpose.msra.mxu0 0.0
    %977 = vmatprep.subr.mxu0 0.0
    %978 = vmatpush1.xpose.msra.mxu0 0.0
    %979 = vmatprep.subr.mxu0 0.0
    %980 = vmatpush1.xpose.msra.mxu0 0.0
    %981 = vmatprep.subr.mxu0 0.0
    %982 = vmatpush1.xpose.msra.mxu0 0.0
    %983 = vmatprep.subr.mxu0 0.0
    %984 = vmatpush1.xpose.msra.mxu0 0.0
    %985 = vmatprep.subr.mxu0 0.0
    %986 = vmatpush1.xpose.msra.mxu0 0.0
    %987 = vmatprep.subr.mxu0 0.0
    %988 = vmatpush1.xpose.msra.mxu0 0.0
    %989 = vmatprep.subr.mxu0 0.0
    %990 = vmatpush1.xpose.msra.mxu0 0.0
    %991 = vmatprep.subr.mxu0 0.0
    %992 = vmatpush1.xpose.msra.mxu0 %v790
    %993 = vmatprep.subr.mxu0 0.0
    %994 = vmatpush2.xpose.msra.mxu0 0.0
    %995 = vmatprep.subr.mxu0 0.0
    %996 = vmatpush2.xpose.msra.mxu0 0.0
    %997 = vmatprep.subr.mxu0 0.0
    %998 = vmatpush2.xpose.msra.mxu0 0.0
    %999 = vmatprep.subr.mxu0 0.0
    %1000 = vmatpush2.xpose.msra.mxu0 0.0
    %1001 = vmatprep.subr.mxu0 0.0
    %1002 = vmatpush2.xpose.msra.mxu0 0.0
    %1003 = vmatprep.subr.mxu0 0.0
    %1004 = vmatpush2.xpose.msra.mxu0 0.0
    %1005 = vmatprep.subr.mxu0 0.0
    %1006 = vmatpush2.xpose.msra.mxu0 0.0
    %1007 = vmatprep.subr.mxu0 0.0
    %1008 = vmatpush2.xpose.msra.mxu0 0.0
    %1009 = vmatprep.subr.mxu0 0.0
    %1010 = vmatpush2.xpose.msra.mxu0 0.0
    %1011 = vmatprep.subr.mxu0 0.0
    %1012 = vmatpush2.xpose.msra.mxu0 0.0
    %1013 = vmatprep.subr.mxu0 0.0
    %1014 = vmatpush2.xpose.msra.mxu0 0.0
    %1015 = vmatprep.subr.mxu0 0.0
    %1016 = vmatpush2.xpose.msra.mxu0 0.0
    %1017 = vmatprep.subr.mxu0 0.0
    %1018 = vmatpush2.xpose.msra.mxu0 0.0
    %1019 = vmatprep.subr.mxu0 0.0
    %1020 = vmatpush2.xpose.msra.mxu0 0.0
    %1021 = vmatprep.subr.mxu0 0.0
    %1022 = vmatpush2.xpose.msra.mxu0 0.0
    %1023 = vmatprep.subr.mxu0 0.0
    %1024 = vmatpush2.xpose.msra.mxu0 0.0
    %1025 = vmatprep.mubr.f32.mxu0 0.0
    %1026 = vmatmul.mubr.f32.gmra.mxu0 %v871
    %v1027 = vpop.f32.mrf.mxu0
    %v1028 = vadd.f32 0.0, %v1027
    %v1029 = vpop.f32.mrf.mxu0
    %1030 = vdwg.mxu0
    %1031 = vmatprep.subr.mxu0 0.0
    %1032 = vmatpush1.xpose.msra.mxu0 0.0
    %1033 = vmatprep.subr.mxu0 0.0
    %1034 = vmatpush1.xpose.msra.mxu0 0.0
    %1035 = vmatprep.subr.mxu0 0.0
    %1036 = vmatpush1.xpose.msra.mxu0 0.0
    %1037 = vmatprep.subr.mxu0 0.0
    %1038 = vmatpush1.xpose.msra.mxu0 0.0
    %1039 = vmatprep.subr.mxu0 0.0
    %1040 = vmatpush1.xpose.msra.mxu0 0.0
    %1041 = vmatprep.subr.mxu0 0.0
    %1042 = vmatpush1.xpose.msra.mxu0 0.0
    %1043 = vmatprep.subr.mxu0 0.0
    %1044 = vmatpush1.xpose.msra.mxu0 0.0
    %1045 = vmatprep.subr.mxu0 0.0
    %1046 = vmatpush1.xpose.msra.mxu0 0.0
    %1047 = vmatprep.subr.mxu0 0.0
    %1048 = vmatpush1.xpose.msra.mxu0 0.0
    %1049 = vmatprep.subr.mxu0 0.0
    %1050 = vmatpush1.xpose.msra.mxu0 0.0
    %1051 = vmatprep.subr.mxu0 0.0
    %1052 = vmatpush1.xpose.msra.mxu0 0.0
    %1053 = vmatprep.subr.mxu0 0.0
    %1054 = vmatpush1.xpose.msra.mxu0 0.0
    %1055 = vmatprep.subr.mxu0 0.0
    %1056 = vmatpush1.xpose.msra.mxu0 0.0
    %1057 = vmatprep.subr.mxu0 0.0
    %1058 = vmatpush1.xpose.msra.mxu0 0.0
    %1059 = vmatprep.subr.mxu0 0.0
    %1060 = vmatpush1.xpose.msra.mxu0 0.0
    %1061 = vmatprep.subr.mxu0 0.0
    %1062 = vmatpush1.xpose.msra.mxu0 %v791
    %1063 = vmatprep.subr.mxu0 0.0
    %1064 = vmatpush2.xpose.msra.mxu0 0.0
    %1065 = vmatprep.subr.mxu0 0.0
    %1066 = vmatpush2.xpose.msra.mxu0 0.0
    %1067 = vmatprep.subr.mxu0 0.0
    %1068 = vmatpush2.xpose.msra.mxu0 0.0
    %1069 = vmatprep.subr.mxu0 0.0
    %1070 = vmatpush2.xpose.msra.mxu0 0.0
    %1071 = vmatprep.subr.mxu0 0.0
    %1072 = vmatpush2.xpose.msra.mxu0 0.0
    %1073 = vmatprep.subr.mxu0 0.0
    %1074 = vmatpush2.xpose.msra.mxu0 0.0
    %1075 = vmatprep.subr.mxu0 0.0
    %1076 = vmatpush2.xpose.msra.mxu0 0.0
    %1077 = vmatprep.subr.mxu0 0.0
    %1078 = vmatpush2.xpose.msra.mxu0 0.0
    %1079 = vmatprep.subr.mxu0 0.0
    %1080 = vmatpush2.xpose.msra.mxu0 0.0
    %1081 = vmatprep.subr.mxu0 0.0
    %1082 = vmatpush2.xpose.msra.mxu0 0.0
    %1083 = vmatprep.subr.mxu0 0.0
    %1084 = vmatpush2.xpose.msra.mxu0 0.0
    %1085 = vmatprep.subr.mxu0 0.0
    %1086 = vmatpush2.xpose.msra.mxu0 0.0
    %1087 = vmatprep.subr.mxu0 0.0
    %1088 = vmatpush2.xpose.msra.mxu0 0.0
    %1089 = vmatprep.subr.mxu0 0.0
    %1090 = vmatpush2.xpose.msra.mxu0 0.0
    %1091 = vmatprep.subr.mxu0 0.0
    %1092 = vmatpush2.xpose.msra.mxu0 0.0
    %1093 = vmatprep.subr.mxu0 0.0
    %1094 = vmatpush2.xpose.msra.mxu0 0.0
    %1095 = vmatprep.mubr.f32.mxu0 0.0
    %1096 = vmatmul.mubr.f32.gmra.mxu0 %v879
    %v1097 = vpop.f32.mrf.mxu0
    %v1098 = vadd.f32 0.0, %v1097
    %v1099 = vpop.f32.mrf.mxu0
    %1100 = vdwg.mxu0
    %1101 = vmatprep.subr.mxu0 0.0
    %1102 = vmatpush1.xpose.msra.mxu0 0.0
    %1103 = vmatprep.subr.mxu0 0.0
    %1104 = vmatpush1.xpose.msra.mxu0 0.0
    %1105 = vmatprep.subr.mxu0 0.0
    %1106 = vmatpush1.xpose.msra.mxu0 0.0
    %1107 = vmatprep.subr.mxu0 0.0
    %1108 = vmatpush1.xpose.msra.mxu0 0.0
    %1109 = vmatprep.subr.mxu0 0.0
    %1110 = vmatpush1.xpose.msra.mxu0 0.0
    %1111 = vmatprep.subr.mxu0 0.0
    %1112 = vmatpush1.xpose.msra.mxu0 0.0
    %1113 = vmatprep.subr.mxu0 0.0
    %1114 = vmatpush1.xpose.msra.mxu0 0.0
    %1115 = vmatprep.subr.mxu0 0.0
    %1116 = vmatpush1.xpose.msra.mxu0 0.0
    %1117 = vmatprep.subr.mxu0 0.0
    %1118 = vmatpush1.xpose.msra.mxu0 0.0
    %1119 = vmatprep.subr.mxu0 0.0
    %1120 = vmatpush1.xpose.msra.mxu0 0.0
    %1121 = vmatprep.subr.mxu0 0.0
    %1122 = vmatpush1.xpose.msra.mxu0 0.0
    %1123 = vmatprep.subr.mxu0 0.0
    %1124 = vmatpush1.xpose.msra.mxu0 0.0
    %1125 = vmatprep.subr.mxu0 0.0
    %1126 = vmatpush1.xpose.msra.mxu0 0.0
    %1127 = vmatprep.subr.mxu0 0.0
    %1128 = vmatpush1.xpose.msra.mxu0 0.0
    %1129 = vmatprep.subr.mxu0 0.0
    %1130 = vmatpush1.xpose.msra.mxu0 0.0
    %1131 = vmatprep.subr.mxu0 0.0
    %1132 = vmatpush1.xpose.msra.mxu0 %v792
    %1133 = vmatprep.subr.mxu0 0.0
    %1134 = vmatpush2.xpose.msra.mxu0 0.0
    %1135 = vmatprep.subr.mxu0 0.0
    %1136 = vmatpush2.xpose.msra.mxu0 0.0
    %1137 = vmatprep.subr.mxu0 0.0
    %1138 = vmatpush2.xpose.msra.mxu0 0.0
    %1139 = vmatprep.subr.mxu0 0.0
    %1140 = vmatpush2.xpose.msra.mxu0 0.0
    %1141 = vmatprep.subr.mxu0 0.0
    %1142 = vmatpush2.xpose.msra.mxu0 0.0
    %1143 = vmatprep.subr.mxu0 0.0
    %1144 = vmatpush2.xpose.msra.mxu0 0.0
    %1145 = vmatprep.subr.mxu0 0.0
    %1146 = vmatpush2.xpose.msra.mxu0 0.0
    %1147 = vmatprep.subr.mxu0 0.0
    %1148 = vmatpush2.xpose.msra.mxu0 0.0
    %1149 = vmatprep.subr.mxu0 0.0
    %1150 = vmatpush2.xpose.msra.mxu0 0.0
    %1151 = vmatprep.subr.mxu0 0.0
    %1152 = vmatpush2.xpose.msra.mxu0 0.0
    %1153 = vmatprep.subr.mxu0 0.0
    %1154 = vmatpush2.xpose.msra.mxu0 0.0
    %1155 = vmatprep.subr.mxu0 0.0
    %1156 = vmatpush2.xpose.msra.mxu0 0.0
    %1157 = vmatprep.subr.mxu0 0.0
    %1158 = vmatpush2.xpose.msra.mxu0 0.0
    %1159 = vmatprep.subr.mxu0 0.0
    %1160 = vmatpush2.xpose.msra.mxu0 0.0
    %1161 = vmatprep.subr.mxu0 0.0
    %1162 = vmatpush2.xpose.msra.mxu0 0.0
    %1163 = vmatprep.subr.mxu0 0.0
    %1164 = vmatpush2.xpose.msra.mxu0 0.0
    %1165 = vmatprep.mubr.f32.mxu0 0.0
    %1166 = vmatmul.mubr.f32.gmra.mxu0 %v881
    %v1167 = vpop.f32.mrf.mxu0
    %v1168 = vadd.f32 0.0, %v1167
    %v1169 = vpop.f32.mrf.mxu0
    %1170 = vdwg.mxu0
    %1171 = vmatprep.subr.mxu0 0.0
    %1172 = vmatpush1.xpose.msra.mxu0 0.0
    %1173 = vmatprep.subr.mxu0 0.0
    %1174 = vmatpush1.xpose.msra.mxu0 0.0
    %1175 = vmatprep.subr.mxu0 0.0
    %1176 = vmatpush1.xpose.msra.mxu0 0.0
    %1177 = vmatprep.subr.mxu0 0.0
    %1178 = vmatpush1.xpose.msra.mxu0 0.0
    %1179 = vmatprep.subr.mxu0 0.0
    %1180 = vmatpush1.xpose.msra.mxu0 0.0
    %1181 = vmatprep.subr.mxu0 0.0
    %1182 = vmatpush1.xpose.msra.mxu0 0.0
    %1183 = vmatprep.subr.mxu0 0.0
    %1184 = vmatpush1.xpose.msra.mxu0 0.0
    %1185 = vmatprep.subr.mxu0 0.0
    %1186 = vmatpush1.xpose.msra.mxu0 0.0
    %1187 = vmatprep.subr.mxu0 0.0
    %1188 = vmatpush1.xpose.msra.mxu0 0.0
    %1189 = vmatprep.subr.mxu0 0.0
    %1190 = vmatpush1.xpose.msra.mxu0 0.0
    %1191 = vmatprep.subr.mxu0 0.0
    %1192 = vmatpush1.xpose.msra.mxu0 0.0
    %1193 = vmatprep.subr.mxu0 0.0
    %1194 = vmatpush1.xpose.msra.mxu0 0.0
    %1195 = vmatprep.subr.mxu0 0.0
    %1196 = vmatpush1.xpose.msra.mxu0 0.0
    %1197 = vmatprep.subr.mxu0 0.0
    %1198 = vmatpush1.xpose.msra.mxu0 0.0
    %1199 = vmatprep.subr.mxu0 0.0
    %1200 = vmatpush1.xpose.msra.mxu0 0.0
    %1201 = vmatprep.subr.mxu0 0.0
    %1202 = vmatpush1.xpose.msra.mxu0 %v793
    %1203 = vmatprep.subr.mxu0 0.0
    %1204 = vmatpush2.xpose.msra.mxu0 0.0
    %1205 = vmatprep.subr.mxu0 0.0
    %1206 = vmatpush2.xpose.msra.mxu0 0.0
    %1207 = vmatprep.subr.mxu0 0.0
    %1208 = vmatpush2.xpose.msra.mxu0 0.0
    %1209 = vmatprep.subr.mxu0 0.0
    %1210 = vmatpush2.xpose.msra.mxu0 0.0
    %1211 = vmatprep.subr.mxu0 0.0
    %1212 = vmatpush2.xpose.msra.mxu0 0.0
    %1213 = vmatprep.subr.mxu0 0.0
    %1214 = vmatpush2.xpose.msra.mxu0 0.0
    %1215 = vmatprep.subr.mxu0 0.0
    %1216 = vmatpush2.xpose.msra.mxu0 0.0
    %1217 = vmatprep.subr.mxu0 0.0
    %1218 = vmatpush2.xpose.msra.mxu0 0.0
    %1219 = vmatprep.subr.mxu0 0.0
    %1220 = vmatpush2.xpose.msra.mxu0 0.0
    %1221 = vmatprep.subr.mxu0 0.0
    %1222 = vmatpush2.xpose.msra.mxu0 0.0
    %1223 = vmatprep.subr.mxu0 0.0
    %1224 = vmatpush2.xpose.msra.mxu0 0.0
    %1225 = vmatprep.subr.mxu0 0.0
    %1226 = vmatpush2.xpose.msra.mxu0 0.0
    %1227 = vmatprep.subr.mxu0 0.0
    %1228 = vmatpush2.xpose.msra.mxu0 0.0
    %1229 = vmatprep.subr.mxu0 0.0
    %1230 = vmatpush2.xpose.msra.mxu0 0.0
    %1231 = vmatprep.subr.mxu0 0.0
    %1232 = vmatpush2.xpose.msra.mxu0 0.0
    %1233 = vmatprep.subr.mxu0 0.0
    %1234 = vmatpush2.xpose.msra.mxu0 0.0
    %1235 = vmatprep.mubr.f32.mxu0 0.0
    %1236 = vmatmul.mubr.f32.gmra.mxu0 %v864
    %v1237 = vpop.f32.mrf.mxu0
    %v1238 = vadd.f32 0.0, %v1237
    %v1239 = vpop.f32.mrf.mxu0
    %1240 = vdwg.mxu0
    %1241 = vmatprep.subr.mxu0 0.0
    %1242 = vmatpush1.xpose.msra.mxu0 0.0
    %1243 = vmatprep.subr.mxu0 0.0
    %1244 = vmatpush1.xpose.msra.mxu0 0.0
    %1245 = vmatprep.subr.mxu0 0.0
    %1246 = vmatpush1.xpose.msra.mxu0 0.0
    %1247 = vmatprep.subr.mxu0 0.0
    %1248 = vmatpush1.xpose.msra.mxu0 0.0
    %1249 = vmatprep.subr.mxu0 0.0
    %1250 = vmatpush1.xpose.msra.mxu0 0.0
    %1251 = vmatprep.subr.mxu0 0.0
    %1252 = vmatpush1.xpose.msra.mxu0 0.0
    %1253 = vmatprep.subr.mxu0 0.0
    %1254 = vmatpush1.xpose.msra.mxu0 0.0
    %1255 = vmatprep.subr.mxu0 0.0
    %1256 = vmatpush1.xpose.msra.mxu0 0.0
    %1257 = vmatprep.subr.mxu0 0.0
    %1258 = vmatpush1.xpose.msra.mxu0 0.0
    %1259 = vmatprep.subr.mxu0 0.0
    %1260 = vmatpush1.xpose.msra.mxu0 0.0
    %1261 = vmatprep.subr.mxu0 0.0
    %1262 = vmatpush1.xpose.msra.mxu0 0.0
    %1263 = vmatprep.subr.mxu0 0.0
    %1264 = vmatpush1.xpose.msra.mxu0 0.0
    %1265 = vmatprep.subr.mxu0 0.0
    %1266 = vmatpush1.xpose.msra.mxu0 0.0
    %1267 = vmatprep.subr.mxu0 0.0
    %1268 = vmatpush1.xpose.msra.mxu0 0.0
    %1269 = vmatprep.subr.mxu0 0.0
    %1270 = vmatpush1.xpose.msra.mxu0 0.0
    %1271 = vmatprep.subr.mxu0 0.0
    %1272 = vmatpush1.xpose.msra.mxu0 %v794
    %1273 = vmatprep.subr.mxu0 0.0
    %1274 = vmatpush2.xpose.msra.mxu0 0.0
    %1275 = vmatprep.subr.mxu0 0.0
    %1276 = vmatpush2.xpose.msra.mxu0 0.0
    %1277 = vmatprep.subr.mxu0 0.0
    %1278 = vmatpush2.xpose.msra.mxu0 0.0
    %1279 = vmatprep.subr.mxu0 0.0
    %1280 = vmatpush2.xpose.msra.mxu0 0.0
    %1281 = vmatprep.subr.mxu0 0.0
    %1282 = vmatpush2.xpose.msra.mxu0 0.0
    %1283 = vmatprep.subr.mxu0 0.0
    %1284 = vmatpush2.xpose.msra.mxu0 0.0
    %1285 = vmatprep.subr.mxu0 0.0
    %1286 = vmatpush2.xpose.msra.mxu0 0.0
    %1287 = vmatprep.subr.mxu0 0.0
    %1288 = vmatpush2.xpose.msra.mxu0 0.0
    %1289 = vmatprep.subr.mxu0 0.0
    %1290 = vmatpush2.xpose.msra.mxu0 0.0
    %1291 = vmatprep.subr.mxu0 0.0
    %1292 = vmatpush2.xpose.msra.mxu0 0.0
    %1293 = vmatprep.subr.mxu0 0.0
    %1294 = vmatpush2.xpose.msra.mxu0 0.0
    %1295 = vmatprep.subr.mxu0 0.0
    %1296 = vmatpush2.xpose.msra.mxu0 0.0
    %1297 = vmatprep.subr.mxu0 0.0
    %1298 = vmatpush2.xpose.msra.mxu0 0.0
    %1299 = vmatprep.subr.mxu0 0.0
    %1300 = vmatpush2.xpose.msra.mxu0 0.0
    %1301 = vmatprep.subr.mxu0 0.0
    %1302 = vmatpush2.xpose.msra.mxu0 0.0
    %1303 = vmatprep.subr.mxu0 0.0
    %1304 = vmatpush2.xpose.msra.mxu0 0.0
    %1305 = vmatprep.mubr.f32.mxu0 0.0
    %1306 = vmatmul.mubr.f32.gmra.mxu0 %v878
    %v1307 = vpop.f32.mrf.mxu0
    %v1308 = vadd.f32 0.0, %v1307
    %v1309 = vpop.f32.mrf.mxu0
    %1310 = vdwg.mxu0
    %1311 = vmatprep.subr.mxu0 0.0
    %1312 = vmatpush1.xpose.msra.mxu0 0.0
    %1313 = vmatprep.subr.mxu0 0.0
    %1314 = vmatpush1.xpose.msra.mxu0 0.0
    %1315 = vmatprep.subr.mxu0 0.0
    %1316 = vmatpush1.xpose.msra.mxu0 0.0
    %1317 = vmatprep.subr.mxu0 0.0
    %1318 = vmatpush1.xpose.msra.mxu0 0.0
    %1319 = vmatprep.subr.mxu0 0.0
    %1320 = vmatpush1.xpose.msra.mxu0 0.0
    %1321 = vmatprep.subr.mxu0 0.0
    %1322 = vmatpush1.xpose.msra.mxu0 0.0
    %1323 = vmatprep.subr.mxu0 0.0
    %1324 = vmatpush1.xpose.msra.mxu0 0.0
    %1325 = vmatprep.subr.mxu0 0.0
    %1326 = vmatpush1.xpose.msra.mxu0 0.0
    %1327 = vmatprep.subr.mxu0 0.0
    %1328 = vmatpush1.xpose.msra.mxu0 0.0
    %1329 = vmatprep.subr.mxu0 0.0
    %1330 = vmatpush1.xpose.msra.mxu0 0.0
    %1331 = vmatprep.subr.mxu0 0.0
    %1332 = vmatpush1.xpose.msra.mxu0 0.0
    %1333 = vmatprep.subr.mxu0 0.0
    %1334 = vmatpush1.xpose.msra.mxu0 0.0
    %1335 = vmatprep.subr.mxu0 0.0
    %1336 = vmatpush1.xpose.msra.mxu0 0.0
    %1337 = vmatprep.subr.mxu0 0.0
    %1338 = vmatpush1.xpose.msra.mxu0 0.0
    %1339 = vmatprep.subr.mxu0 0.0
    %1340 = vmatpush1.xpose.msra.mxu0 0.0
    %1341 = vmatprep.subr.mxu0 0.0
    %1342 = vmatpush1.xpose.msra.mxu0 %v795
    %1343 = vmatprep.subr.mxu0 0.0
    %1344 = vmatpush2.xpose.msra.mxu0 0.0
    %1345 = vmatprep.subr.mxu0 0.0
    %1346 = vmatpush2.xpose.msra.mxu0 0.0
    %1347 = vmatprep.subr.mxu0 0.0
    %1348 = vmatpush2.xpose.msra.mxu0 0.0
    %1349 = vmatprep.subr.mxu0 0.0
    %1350 = vmatpush2.xpose.msra.mxu0 0.0
    %1351 = vmatprep.subr.mxu0 0.0
    %1352 = vmatpush2.xpose.msra.mxu0 0.0
    %1353 = vmatprep.subr.mxu0 0.0
    %1354 = vmatpush2.xpose.msra.mxu0 0.0
    %1355 = vmatprep.subr.mxu0 0.0
    %1356 = vmatpush2.xpose.msra.mxu0 0.0
    %1357 = vmatprep.subr.mxu0 0.0
    %1358 = vmatpush2.xpose.msra.mxu0 0.0
    %1359 = vmatprep.subr.mxu0 0.0
    %1360 = vmatpush2.xpose.msra.mxu0 0.0
    %1361 = vmatprep.subr.mxu0 0.0
    %1362 = vmatpush2.xpose.msra.mxu0 0.0
    %1363 = vmatprep.subr.mxu0 0.0
    %1364 = vmatpush2.xpose.msra.mxu0 0.0
    %1365 = vmatprep.subr.mxu0 0.0
    %1366 = vmatpush2.xpose.msra.mxu0 0.0
    %1367 = vmatprep.subr.mxu0 0.0
    %1368 = vmatpush2.xpose.msra.mxu0 0.0
    %1369 = vmatprep.subr.mxu0 0.0
    %1370 = vmatpush2.xpose.msra.mxu0 0.0
    %1371 = vmatprep.subr.mxu0 0.0
    %1372 = vmatpush2.xpose.msra.mxu0 0.0
    %1373 = vmatprep.subr.mxu0 0.0
    %1374 = vmatpush2.xpose.msra.mxu0 0.0
    %1375 = vmatprep.mubr.f32.mxu0 0.0
    %1376 = vmatmul.mubr.f32.gmra.mxu0 %v880
    %v1377 = vpop.f32.mrf.mxu0
    %v1378 = vadd.f32 0.0, %v1377
    %v1379 = vpop.f32.mrf.mxu0
    %1380 = vdwg.mxu0
    %1381 = vmatprep.subr.mxu0 0.0
    %1382 = vmatpush1.xpose.msra.mxu0 0.0
    %1383 = vmatprep.subr.mxu0 0.0
    %1384 = vmatpush1.xpose.msra.mxu0 0.0
    %1385 = vmatprep.subr.mxu0 0.0
    %1386 = vmatpush1.xpose.msra.mxu0 0.0
    %1387 = vmatprep.subr.mxu0 0.0
    %1388 = vmatpush1.xpose.msra.mxu0 0.0
    %1389 = vmatprep.subr.mxu0 0.0
    %1390 = vmatpush1.xpose.msra.mxu0 0.0
    %1391 = vmatprep.subr.mxu0 0.0
    %1392 = vmatpush1.xpose.msra.mxu0 0.0
    %1393 = vmatprep.subr.mxu0 0.0
    %1394 = vmatpush1.xpose.msra.mxu0 0.0
    %1395 = vmatprep.subr.mxu0 0.0
    %1396 = vmatpush1.xpose.msra.mxu0 0.0
    %1397 = vmatprep.subr.mxu0 0.0
    %1398 = vmatpush1.xpose.msra.mxu0 0.0
    %1399 = vmatprep.subr.mxu0 0.0
    %1400 = vmatpush1.xpose.msra.mxu0 0.0
    %1401 = vmatprep.subr.mxu0 0.0
    %1402 = vmatpush1.xpose.msra.mxu0 0.0
    %1403 = vmatprep.subr.mxu0 0.0
    %1404 = vmatpush1.xpose.msra.mxu0 0.0
    %1405 = vmatprep.subr.mxu0 0.0
    %1406 = vmatpush1.xpose.msra.mxu0 0.0
    %1407 = vmatprep.subr.mxu0 0.0
    %1408 = vmatpush1.xpose.msra.mxu0 0.0
    %1409 = vmatprep.subr.mxu0 0.0
    %1410 = vmatpush1.xpose.msra.mxu0 0.0
    %1411 = vmatprep.subr.mxu0 0.0
    %1412 = vmatpush1.xpose.msra.mxu0 %v796
    %1413 = vmatprep.subr.mxu0 0.0
    %1414 = vmatpush2.xpose.msra.mxu0 0.0
    %1415 = vmatprep.subr.mxu0 0.0
    %1416 = vmatpush2.xpose.msra.mxu0 0.0
    %1417 = vmatprep.subr.mxu0 0.0
    %1418 = vmatpush2.xpose.msra.mxu0 0.0
    %1419 = vmatprep.subr.mxu0 0.0
    %1420 = vmatpush2.xpose.msra.mxu0 0.0
    %1421 = vmatprep.subr.mxu0 0.0
    %1422 = vmatpush2.xpose.msra.mxu0 0.0
    %1423 = vmatprep.subr.mxu0 0.0
    %1424 = vmatpush2.xpose.msra.mxu0 0.0
    %1425 = vmatprep.subr.mxu0 0.0
    %1426 = vmatpush2.xpose.msra.mxu0 0.0
    %1427 = vmatprep.subr.mxu0 0.0
    %1428 = vmatpush2.xpose.msra.mxu0 0.0
    %1429 = vmatprep.subr.mxu0 0.0
    %1430 = vmatpush2.xpose.msra.mxu0 0.0
    %1431 = vmatprep.subr.mxu0 0.0
    %1432 = vmatpush2.xpose.msra.mxu0 0.0
    %1433 = vmatprep.subr.mxu0 0.0
    %1434 = vmatpush2.xpose.msra.mxu0 0.0
    %1435 = vmatprep.subr.mxu0 0.0
    %1436 = vmatpush2.xpose.msra.mxu0 0.0
    %1437 = vmatprep.subr.mxu0 0.0
    %1438 = vmatpush2.xpose.msra.mxu0 0.0
    %1439 = vmatprep.subr.mxu0 0.0
    %1440 = vmatpush2.xpose.msra.mxu0 0.0
    %1441 = vmatprep.subr.mxu0 0.0
    %1442 = vmatpush2.xpose.msra.mxu0 0.0
    %1443 = vmatprep.subr.mxu0 0.0
    %1444 = vmatpush2.xpose.msra.mxu0 0.0
    %1445 = vmatprep.mubr.f32.mxu0 0.0
    %1446 = vmatmul.mubr.f32.gmra.mxu0 %v882
    %v1447 = vpop.f32.mrf.mxu0
    %v1448 = vadd.f32 0.0, %v1447
    %v1449 = vpop.f32.mrf.mxu0
    %1450 = vdwg.mxu0
    %v1451 = vmul.f32 %v958, 2.0
    %v1452 = vmul.f32 %v1028, 2.0
    %v1453 = vmul.f32 %v1098, 2.0
    %v1454 = vmul.f32 %v1168, 2.0
    %v1455 = vmul.f32 %v1238, 2.0
    %v1456 = vmul.f32 %v1308, 2.0
    %v1457 = vmul.f32 %v1378, 2.0
    %v1458 = vmul.f32 %v1448, 2.0
    %v1467 = vrot.slane %v1452, 7
    %vm1468 = vcmask 1041409
    %v1469 = vsel %vm1468, %v1467, %v1451
    %v1470 = vrot.slane %v1453, 6
    %vm1471 = vcmask 1042434
    %v1472 = vsel %vm1471, %v1470, %v1469
    %v1473 = vrot.slane %v1454, 5
    %vm1474 = vcmask 1043459
    %v1475 = vsel %vm1474, %v1473, %v1472
    %v1476 = vrot.slane %v1455, 4
    %vm1477 = vcmask 1044484
    %v1478 = vsel %vm1477, %v1476, %v1475
    %v1479 = vrot.slane %v1456, 3
    %vm1480 = vcmask 1045509
    %v1481 = vsel %vm1480, %v1479, %v1478
    %v1482 = vrot.slane %v1457, 2
    %vm1483 = vcmask 1046534
    %v1484 = vsel %vm1483, %v1482, %v1481
    %v1485 = vrot.slane %v1458, 1
    %vm1486 = vcmask 1047559
    %v1487 = vsel %vm1486, %v1485, %v1484
    %v1489 = vsub.f32 %v799, %v1487
    %v1498 = vlaneseq
    %v1499 = vand.u32 %v1498, 127
    %v1500 = vlaneseq
    %v1501 = vshrl.u32 %v1500, 7
    %v1502 = vsub.s32 %v1499, %v1501
    %v1503 = vrot.slane %v811, %v1502
    %v1504 = vlaneseq
    %v1505 = vshrl.u32 %v1504, 7
    %v1506 = vsub.s32 %v1499, %v1505
    %v1507 = vrot.slane %v814, %v1506
    %v1508 = vlaneseq
    %v1509 = vshrl.u32 %v1508, 7
    %v1510 = vsub.s32 %v1499, %v1509
    %v1511 = vrot.slane %v817, %v1510
    %v1512 = vlaneseq
    %v1513 = vshrl.u32 %v1512, 7
    %v1514 = vsub.s32 %v1499, %v1513
    %v1515 = vrot.slane %v820, %v1514
    %v1516 = vlaneseq
    %v1517 = vshrl.u32 %v1516, 7
    %v1518 = vsub.s32 %v1499, %v1517
    %v1519 = vrot.slane %v823, %v1518
    %v1520 = vlaneseq
    %v1521 = vshrl.u32 %v1520, 7
    %v1522 = vsub.s32 %v1499, %v1521
    %v1523 = vrot.slane %v826, %v1522
    %v1524 = vlaneseq
    %v1525 = vshrl.u32 %v1524, 7
    %v1526 = vsub.s32 %v1499, %v1525
    %v1527 = vrot.slane %v829, %v1526
    %v1528 = vlaneseq
    %v1529 = vshrl.u32 %v1528, 7
    %v1530 = vsub.s32 %v1499, %v1529
    %v1531 = vrot.slane %v832, %v1530
    %v1532 = vsel %vm1468, %v1507, %v1503
    %v1533 = vsel %vm1471, %v1511, %v1532
    %v1534 = vsel %vm1474, %v1515, %v1533
    %v1535 = vsel %vm1477, %v1519, %v1534
    %v1536 = vsel %vm1480, %v1523, %v1535
    %v1537 = vsel %vm1483, %v1527, %v1536
    %v1538 = vsel %vm1486, %v1531, %v1537
    %v1540 = vadd.f32 %v1489, %v1538
    %v1541 = vsub.f32 0.0, %v1540
    %v1542 = vld [vmem:[%s7] sm:$0xf]
    %v1543 = vld [vmem:[%s7 + $0x4] sm:$0xf]
    %v1544 = vld [vmem:[%s7 + $0x8] sm:$0xf]
    %v1545 = vld [vmem:[%s7 + $0xc] sm:$0xf]
    %v1546 = vld [vmem:[%s7 + $0x10] sm:$0xf]
    %v1547 = vld [vmem:[%s7 + $0x14] sm:$0xf]
    %v1548 = vld [vmem:[%s7 + $0x18] sm:$0xf]
    %v1549 = vld [vmem:[%s7 + $0x1c] sm:$0xf]
    %v1550 = vmul.f32 %v786, %v786
    %1551 = vadd.xlane.f32.xlu0 %v1550
    %v1552 = vpop.xlane.xlu0 %1551
    %v1553 = vmul.f32 %v1542, %v1542
    %v1554 = vmul.f32 %v1543, %v1543
    %v1555 = vmul.f32 %v1544, %v1544
    %v1556 = vmul.f32 %v1545, %v1545
    %v1557 = vmul.f32 %v1546, %v1546
    %v1558 = vmul.f32 %v1547, %v1547
    %v1559 = vmul.f32 %v1548, %v1548
    %v1560 = vmul.f32 %v1549, %v1549
    %v1561 = vsel %vm808, %v1553, 0.0
    %1562 = vadd.xlane.f32.xlu0 %v1561
    %v1563 = vpop.xlane.xlu0 %1562
    %v1564 = vsel %vm808, %v1554, 0.0
    %1565 = vadd.xlane.f32.xlu0 %v1564
    %v1566 = vpop.xlane.xlu0 %1565
    %v1567 = vsel %vm808, %v1555, 0.0
    %1568 = vadd.xlane.f32.xlu0 %v1567
    %v1569 = vpop.xlane.xlu0 %1568
    %v1570 = vsel %vm808, %v1556, 0.0
    %1571 = vadd.xlane.f32.xlu0 %v1570
    %v1572 = vpop.xlane.xlu0 %1571
    %v1573 = vsel %vm808, %v1557, 0.0
    %1574 = vadd.xlane.f32.xlu0 %v1573
    %v1575 = vpop.xlane.xlu0 %1574
    %v1576 = vsel %vm808, %v1558, 0.0
    %1577 = vadd.xlane.f32.xlu0 %v1576
    %v1578 = vpop.xlane.xlu0 %1577
    %v1579 = vsel %vm808, %v1559, 0.0
    %1580 = vadd.xlane.f32.xlu0 %v1579
    %v1581 = vpop.xlane.xlu0 %1580
    %v1582 = vsel %vm808, %v1560, 0.0
    %1583 = vadd.xlane.f32.xlu0 %v1582
    %v1584 = vpop.xlane.xlu0 %1583
    %v1586 = vcombine.high %v786, %v786
    %v1588 = vunpack.c.l.s4 1966171168
    %v1589 = vunpack.c.0.s8 %v1588
    %v1590 = vlaneseq
    %v1591 = vshrl.u32 %v1590, 7
    %v1592 = vsub.s32 %v1589, %v1591
    %v1593 = vrot.slane %v786, %v1592
    %v1595 = vunpack.c.l.s4 1966171168
    %v1596 = vunpack.c.0.s8 %v1595
    %v1597 = vlaneseq
    %v1598 = vshrl.u32 %v1597, 7
    %v1599 = vsub.s32 %v1596, %v1598
    %v1600 = vrot.slane %v1586, %v1599
    %v1601 = vcombine.high %v1593, %v1593
    %v1602 = vcombine.high %v1600, %v1600
    %v1604 = vunpack.c.l.s4 1966171168
    %v1605 = vunpack.c.0.s8 %v1604
    %v1606 = vlaneseq
    %v1607 = vshrl.u32 %v1606, 7
    %v1608 = vsub.s32 %v1605, %v1607
    %v1609 = vrot.slane %v1593, %v1608
    %v1611 = vunpack.c.l.s4 1966171168
    %v1612 = vunpack.c.0.s8 %v1611
    %v1613 = vlaneseq
    %v1614 = vshrl.u32 %v1613, 7
    %v1615 = vsub.s32 %v1612, %v1614
    %v1616 = vrot.slane %v1600, %v1615
    %v1618 = vunpack.c.l.s4 1966171168
    %v1619 = vunpack.c.0.s8 %v1618
    %v1620 = vlaneseq
    %v1621 = vshrl.u32 %v1620, 7
    %v1622 = vsub.s32 %v1619, %v1621
    %v1623 = vrot.slane %v1601, %v1622
    %v1625 = vunpack.c.l.s4 1966171168
    %v1626 = vunpack.c.0.s8 %v1625
    %v1627 = vlaneseq
    %v1628 = vshrl.u32 %v1627, 7
    %v1629 = vsub.s32 %v1626, %v1628
    %v1630 = vrot.slane %v1602, %v1629
    %v1631 = vcombine.high %v1609, %v1609
    %v1632 = vcombine.high %v1616, %v1616
    %v1633 = vcombine.high %v1623, %v1623
    %v1634 = vcombine.high %v1630, %v1630
    %1643 = vmatprep.subr.mxu0 0.0
    %1644 = vmatpush1.xpose.msra.mxu0 0.0
    %1645 = vmatprep.subr.mxu0 0.0
    %1646 = vmatpush1.xpose.msra.mxu0 0.0
    %1647 = vmatprep.subr.mxu0 0.0
    %1648 = vmatpush1.xpose.msra.mxu0 0.0
    %1649 = vmatprep.subr.mxu0 0.0
    %1650 = vmatpush1.xpose.msra.mxu0 0.0
    %1651 = vmatprep.subr.mxu0 0.0
    %1652 = vmatpush1.xpose.msra.mxu0 0.0
    %1653 = vmatprep.subr.mxu0 0.0
    %1654 = vmatpush1.xpose.msra.mxu0 0.0
    %1655 = vmatprep.subr.mxu0 0.0
    %1656 = vmatpush1.xpose.msra.mxu0 0.0
    %1657 = vmatprep.subr.mxu0 0.0
    %1658 = vmatpush1.xpose.msra.mxu0 0.0
    %1659 = vmatprep.subr.mxu0 0.0
    %1660 = vmatpush1.xpose.msra.mxu0 0.0
    %1661 = vmatprep.subr.mxu0 0.0
    %1662 = vmatpush1.xpose.msra.mxu0 0.0
    %1663 = vmatprep.subr.mxu0 0.0
    %1664 = vmatpush1.xpose.msra.mxu0 0.0
    %1665 = vmatprep.subr.mxu0 0.0
    %1666 = vmatpush1.xpose.msra.mxu0 0.0
    %1667 = vmatprep.subr.mxu0 0.0
    %1668 = vmatpush1.xpose.msra.mxu0 0.0
    %1669 = vmatprep.subr.mxu0 0.0
    %1670 = vmatpush1.xpose.msra.mxu0 0.0
    %1671 = vmatprep.subr.mxu0 0.0
    %1672 = vmatpush1.xpose.msra.mxu0 0.0
    %1673 = vmatprep.subr.mxu0 0.0
    %1674 = vmatpush1.xpose.msra.mxu0 %v1542
    %1675 = vmatprep.subr.mxu0 0.0
    %1676 = vmatpush2.xpose.msra.mxu0 0.0
    %1677 = vmatprep.subr.mxu0 0.0
    %1678 = vmatpush2.xpose.msra.mxu0 0.0
    %1679 = vmatprep.subr.mxu0 0.0
    %1680 = vmatpush2.xpose.msra.mxu0 0.0
    %1681 = vmatprep.subr.mxu0 0.0
    %1682 = vmatpush2.xpose.msra.mxu0 0.0
    %1683 = vmatprep.subr.mxu0 0.0
    %1684 = vmatpush2.xpose.msra.mxu0 0.0
    %1685 = vmatprep.subr.mxu0 0.0
    %1686 = vmatpush2.xpose.msra.mxu0 0.0
    %1687 = vmatprep.subr.mxu0 0.0
    %1688 = vmatpush2.xpose.msra.mxu0 0.0
    %1689 = vmatprep.subr.mxu0 0.0
    %1690 = vmatpush2.xpose.msra.mxu0 0.0
    %1691 = vmatprep.subr.mxu0 0.0
    %1692 = vmatpush2.xpose.msra.mxu0 0.0
    %1693 = vmatprep.subr.mxu0 0.0
    %1694 = vmatpush2.xpose.msra.mxu0 0.0
    %1695 = vmatprep.subr.mxu0 0.0
    %1696 = vmatpush2.xpose.msra.mxu0 0.0
    %1697 = vmatprep.subr.mxu0 0.0
    %1698 = vmatpush2.xpose.msra.mxu0 0.0
    %1699 = vmatprep.subr.mxu0 0.0
    %1700 = vmatpush2.xpose.msra.mxu0 0.0
    %1701 = vmatprep.subr.mxu0 0.0
    %1702 = vmatpush2.xpose.msra.mxu0 0.0
    %1703 = vmatprep.subr.mxu0 0.0
    %1704 = vmatpush2.xpose.msra.mxu0 0.0
    %1705 = vmatprep.subr.mxu0 0.0
    %1706 = vmatpush2.xpose.msra.mxu0 0.0
    %1707 = vmatprep.mubr.f32.mxu0 0.0
    %1708 = vmatmul.mubr.f32.gmra.mxu0 %v1609
    %v1709 = vpop.f32.mrf.mxu0
    %v1710 = vadd.f32 0.0, %v1709
    %v1711 = vpop.f32.mrf.mxu0
    %1712 = vdwg.mxu0
    %1713 = vmatprep.subr.mxu0 0.0
    %1714 = vmatpush1.xpose.msra.mxu0 0.0
    %1715 = vmatprep.subr.mxu0 0.0
    %1716 = vmatpush1.xpose.msra.mxu0 0.0
    %1717 = vmatprep.subr.mxu0 0.0
    %1718 = vmatpush1.xpose.msra.mxu0 0.0
    %1719 = vmatprep.subr.mxu0 0.0
    %1720 = vmatpush1.xpose.msra.mxu0 0.0
    %1721 = vmatprep.subr.mxu0 0.0
    %1722 = vmatpush1.xpose.msra.mxu0 0.0
    %1723 = vmatprep.subr.mxu0 0.0
    %1724 = vmatpush1.xpose.msra.mxu0 0.0
    %1725 = vmatprep.subr.mxu0 0.0
    %1726 = vmatpush1.xpose.msra.mxu0 0.0
    %1727 = vmatprep.subr.mxu0 0.0
    %1728 = vmatpush1.xpose.msra.mxu0 0.0
    %1729 = vmatprep.subr.mxu0 0.0
    %1730 = vmatpush1.xpose.msra.mxu0 0.0
    %1731 = vmatprep.subr.mxu0 0.0
    %1732 = vmatpush1.xpose.msra.mxu0 0.0
    %1733 = vmatprep.subr.mxu0 0.0
    %1734 = vmatpush1.xpose.msra.mxu0 0.0
    %1735 = vmatprep.subr.mxu0 0.0
    %1736 = vmatpush1.xpose.msra.mxu0 0.0
    %1737 = vmatprep.subr.mxu0 0.0
    %1738 = vmatpush1.xpose.msra.mxu0 0.0
    %1739 = vmatprep.subr.mxu0 0.0
    %1740 = vmatpush1.xpose.msra.mxu0 0.0
    %1741 = vmatprep.subr.mxu0 0.0
    %1742 = vmatpush1.xpose.msra.mxu0 0.0
    %1743 = vmatprep.subr.mxu0 0.0
    %1744 = vmatpush1.xpose.msra.mxu0 %v1543
    %1745 = vmatprep.subr.mxu0 0.0
    %1746 = vmatpush2.xpose.msra.mxu0 0.0
    %1747 = vmatprep.subr.mxu0 0.0
    %1748 = vmatpush2.xpose.msra.mxu0 0.0
    %1749 = vmatprep.subr.mxu0 0.0
    %1750 = vmatpush2.xpose.msra.mxu0 0.0
    %1751 = vmatprep.subr.mxu0 0.0
    %1752 = vmatpush2.xpose.msra.mxu0 0.0
    %1753 = vmatprep.subr.mxu0 0.0
    %1754 = vmatpush2.xpose.msra.mxu0 0.0
    %1755 = vmatprep.subr.mxu0 0.0
    %1756 = vmatpush2.xpose.msra.mxu0 0.0
    %1757 = vmatprep.subr.mxu0 0.0
    %1758 = vmatpush2.xpose.msra.mxu0 0.0
    %1759 = vmatprep.subr.mxu0 0.0
    %1760 = vmatpush2.xpose.msra.mxu0 0.0
    %1761 = vmatprep.subr.mxu0 0.0
    %1762 = vmatpush2.xpose.msra.mxu0 0.0
    %1763 = vmatprep.subr.mxu0 0.0
    %1764 = vmatpush2.xpose.msra.mxu0 0.0
    %1765 = vmatprep.subr.mxu0 0.0
    %1766 = vmatpush2.xpose.msra.mxu0 0.0
    %1767 = vmatprep.subr.mxu0 0.0
    %1768 = vmatpush2.xpose.msra.mxu0 0.0
    %1769 = vmatprep.subr.mxu0 0.0
    %1770 = vmatpush2.xpose.msra.mxu0 0.0
    %1771 = vmatprep.subr.mxu0 0.0
    %1772 = vmatpush2.xpose.msra.mxu0 0.0
    %1773 = vmatprep.subr.mxu0 0.0
    %1774 = vmatpush2.xpose.msra.mxu0 0.0
    %1775 = vmatprep.subr.mxu0 0.0
    %1776 = vmatpush2.xpose.msra.mxu0 0.0
    %1777 = vmatprep.mubr.f32.mxu0 0.0
    %1778 = vmatmul.mubr.f32.gmra.mxu0 %v1623
    %v1779 = vpop.f32.mrf.mxu0
    %v1780 = vadd.f32 0.0, %v1779
    %v1781 = vpop.f32.mrf.mxu0
    %1782 = vdwg.mxu0
    %1783 = vmatprep.subr.mxu0 0.0
    %1784 = vmatpush1.xpose.msra.mxu0 0.0
    %1785 = vmatprep.subr.mxu0 0.0
    %1786 = vmatpush1.xpose.msra.mxu0 0.0
    %1787 = vmatprep.subr.mxu0 0.0
    %1788 = vmatpush1.xpose.msra.mxu0 0.0
    %1789 = vmatprep.subr.mxu0 0.0
    %1790 = vmatpush1.xpose.msra.mxu0 0.0
    %1791 = vmatprep.subr.mxu0 0.0
    %1792 = vmatpush1.xpose.msra.mxu0 0.0
    %1793 = vmatprep.subr.mxu0 0.0
    %1794 = vmatpush1.xpose.msra.mxu0 0.0
    %1795 = vmatprep.subr.mxu0 0.0
    %1796 = vmatpush1.xpose.msra.mxu0 0.0
    %1797 = vmatprep.subr.mxu0 0.0
    %1798 = vmatpush1.xpose.msra.mxu0 0.0
    %1799 = vmatprep.subr.mxu0 0.0
    %1800 = vmatpush1.xpose.msra.mxu0 0.0
    %1801 = vmatprep.subr.mxu0 0.0
    %1802 = vmatpush1.xpose.msra.mxu0 0.0
    %1803 = vmatprep.subr.mxu0 0.0
    %1804 = vmatpush1.xpose.msra.mxu0 0.0
    %1805 = vmatprep.subr.mxu0 0.0
    %1806 = vmatpush1.xpose.msra.mxu0 0.0
    %1807 = vmatprep.subr.mxu0 0.0
    %1808 = vmatpush1.xpose.msra.mxu0 0.0
    %1809 = vmatprep.subr.mxu0 0.0
    %1810 = vmatpush1.xpose.msra.mxu0 0.0
    %1811 = vmatprep.subr.mxu0 0.0
    %1812 = vmatpush1.xpose.msra.mxu0 0.0
    %1813 = vmatprep.subr.mxu0 0.0
    %1814 = vmatpush1.xpose.msra.mxu0 %v1544
    %1815 = vmatprep.subr.mxu0 0.0
    %1816 = vmatpush2.xpose.msra.mxu0 0.0
    %1817 = vmatprep.subr.mxu0 0.0
    %1818 = vmatpush2.xpose.msra.mxu0 0.0
    %1819 = vmatprep.subr.mxu0 0.0
    %1820 = vmatpush2.xpose.msra.mxu0 0.0
    %1821 = vmatprep.subr.mxu0 0.0
    %1822 = vmatpush2.xpose.msra.mxu0 0.0
    %1823 = vmatprep.subr.mxu0 0.0
    %1824 = vmatpush2.xpose.msra.mxu0 0.0
    %1825 = vmatprep.subr.mxu0 0.0
    %1826 = vmatpush2.xpose.msra.mxu0 0.0
    %1827 = vmatprep.subr.mxu0 0.0
    %1828 = vmatpush2.xpose.msra.mxu0 0.0
    %1829 = vmatprep.subr.mxu0 0.0
    %1830 = vmatpush2.xpose.msra.mxu0 0.0
    %1831 = vmatprep.subr.mxu0 0.0
    %1832 = vmatpush2.xpose.msra.mxu0 0.0
    %1833 = vmatprep.subr.mxu0 0.0
    %1834 = vmatpush2.xpose.msra.mxu0 0.0
    %1835 = vmatprep.subr.mxu0 0.0
    %1836 = vmatpush2.xpose.msra.mxu0 0.0
    %1837 = vmatprep.subr.mxu0 0.0
    %1838 = vmatpush2.xpose.msra.mxu0 0.0
    %1839 = vmatprep.subr.mxu0 0.0
    %1840 = vmatpush2.xpose.msra.mxu0 0.0
    %1841 = vmatprep.subr.mxu0 0.0
    %1842 = vmatpush2.xpose.msra.mxu0 0.0
    %1843 = vmatprep.subr.mxu0 0.0
    %1844 = vmatpush2.xpose.msra.mxu0 0.0
    %1845 = vmatprep.subr.mxu0 0.0
    %1846 = vmatpush2.xpose.msra.mxu0 0.0
    %1847 = vmatprep.mubr.f32.mxu0 0.0
    %1848 = vmatmul.mubr.f32.gmra.mxu0 %v1631
    %v1849 = vpop.f32.mrf.mxu0
    %v1850 = vadd.f32 0.0, %v1849
    %v1851 = vpop.f32.mrf.mxu0
    %1852 = vdwg.mxu0
    %1853 = vmatprep.subr.mxu0 0.0
    %1854 = vmatpush1.xpose.msra.mxu0 0.0
    %1855 = vmatprep.subr.mxu0 0.0
    %1856 = vmatpush1.xpose.msra.mxu0 0.0
    %1857 = vmatprep.subr.mxu0 0.0
    %1858 = vmatpush1.xpose.msra.mxu0 0.0
    %1859 = vmatprep.subr.mxu0 0.0
    %1860 = vmatpush1.xpose.msra.mxu0 0.0
    %1861 = vmatprep.subr.mxu0 0.0
    %1862 = vmatpush1.xpose.msra.mxu0 0.0
    %1863 = vmatprep.subr.mxu0 0.0
    %1864 = vmatpush1.xpose.msra.mxu0 0.0
    %1865 = vmatprep.subr.mxu0 0.0
    %1866 = vmatpush1.xpose.msra.mxu0 0.0
    %1867 = vmatprep.subr.mxu0 0.0
    %1868 = vmatpush1.xpose.msra.mxu0 0.0
    %1869 = vmatprep.subr.mxu0 0.0
    %1870 = vmatpush1.xpose.msra.mxu0 0.0
    %1871 = vmatprep.subr.mxu0 0.0
    %1872 = vmatpush1.xpose.msra.mxu0 0.0
    %1873 = vmatprep.subr.mxu0 0.0
    %1874 = vmatpush1.xpose.msra.mxu0 0.0
    %1875 = vmatprep.subr.mxu0 0.0
    %1876 = vmatpush1.xpose.msra.mxu0 0.0
    %1877 = vmatprep.subr.mxu0 0.0
    %1878 = vmatpush1.xpose.msra.mxu0 0.0
    %1879 = vmatprep.subr.mxu0 0.0
    %1880 = vmatpush1.xpose.msra.mxu0 0.0
    %1881 = vmatprep.subr.mxu0 0.0
    %1882 = vmatpush1.xpose.msra.mxu0 0.0
    %1883 = vmatprep.subr.mxu0 0.0
    %1884 = vmatpush1.xpose.msra.mxu0 %v1545
    %1885 = vmatprep.subr.mxu0 0.0
    %1886 = vmatpush2.xpose.msra.mxu0 0.0
    %1887 = vmatprep.subr.mxu0 0.0
    %1888 = vmatpush2.xpose.msra.mxu0 0.0
    %1889 = vmatprep.subr.mxu0 0.0
    %1890 = vmatpush2.xpose.msra.mxu0 0.0
    %1891 = vmatprep.subr.mxu0 0.0
    %1892 = vmatpush2.xpose.msra.mxu0 0.0
    %1893 = vmatprep.subr.mxu0 0.0
    %1894 = vmatpush2.xpose.msra.mxu0 0.0
    %1895 = vmatprep.subr.mxu0 0.0
    %1896 = vmatpush2.xpose.msra.mxu0 0.0
    %1897 = vmatprep.subr.mxu0 0.0
    %1898 = vmatpush2.xpose.msra.mxu0 0.0
    %1899 = vmatprep.subr.mxu0 0.0
    %1900 = vmatpush2.xpose.msra.mxu0 0.0
    %1901 = vmatprep.subr.mxu0 0.0
    %1902 = vmatpush2.xpose.msra.mxu0 0.0
    %1903 = vmatprep.subr.mxu0 0.0
    %1904 = vmatpush2.xpose.msra.mxu0 0.0
    %1905 = vmatprep.subr.mxu0 0.0
    %1906 = vmatpush2.xpose.msra.mxu0 0.0
    %1907 = vmatprep.subr.mxu0 0.0
    %1908 = vmatpush2.xpose.msra.mxu0 0.0
    %1909 = vmatprep.subr.mxu0 0.0
    %1910 = vmatpush2.xpose.msra.mxu0 0.0
    %1911 = vmatprep.subr.mxu0 0.0
    %1912 = vmatpush2.xpose.msra.mxu0 0.0
    %1913 = vmatprep.subr.mxu0 0.0
    %1914 = vmatpush2.xpose.msra.mxu0 0.0
    %1915 = vmatprep.subr.mxu0 0.0
    %1916 = vmatpush2.xpose.msra.mxu0 0.0
    %1917 = vmatprep.mubr.f32.mxu0 0.0
    %1918 = vmatmul.mubr.f32.gmra.mxu0 %v1633
    %v1919 = vpop.f32.mrf.mxu0
    %v1920 = vadd.f32 0.0, %v1919
    %v1921 = vpop.f32.mrf.mxu0
    %1922 = vdwg.mxu0
    %1923 = vmatprep.subr.mxu0 0.0
    %1924 = vmatpush1.xpose.msra.mxu0 0.0
    %1925 = vmatprep.subr.mxu0 0.0
    %1926 = vmatpush1.xpose.msra.mxu0 0.0
    %1927 = vmatprep.subr.mxu0 0.0
    %1928 = vmatpush1.xpose.msra.mxu0 0.0
    %1929 = vmatprep.subr.mxu0 0.0
    %1930 = vmatpush1.xpose.msra.mxu0 0.0
    %1931 = vmatprep.subr.mxu0 0.0
    %1932 = vmatpush1.xpose.msra.mxu0 0.0
    %1933 = vmatprep.subr.mxu0 0.0
    %1934 = vmatpush1.xpose.msra.mxu0 0.0
    %1935 = vmatprep.subr.mxu0 0.0
    %1936 = vmatpush1.xpose.msra.mxu0 0.0
    %1937 = vmatprep.subr.mxu0 0.0
    %1938 = vmatpush1.xpose.msra.mxu0 0.0
    %1939 = vmatprep.subr.mxu0 0.0
    %1940 = vmatpush1.xpose.msra.mxu0 0.0
    %1941 = vmatprep.subr.mxu0 0.0
    %1942 = vmatpush1.xpose.msra.mxu0 0.0
    %1943 = vmatprep.subr.mxu0 0.0
    %1944 = vmatpush1.xpose.msra.mxu0 0.0
    %1945 = vmatprep.subr.mxu0 0.0
    %1946 = vmatpush1.xpose.msra.mxu0 0.0
    %1947 = vmatprep.subr.mxu0 0.0
    %1948 = vmatpush1.xpose.msra.mxu0 0.0
    %1949 = vmatprep.subr.mxu0 0.0
    %1950 = vmatpush1.xpose.msra.mxu0 0.0
    %1951 = vmatprep.subr.mxu0 0.0
    %1952 = vmatpush1.xpose.msra.mxu0 0.0
    %1953 = vmatprep.subr.mxu0 0.0
    %1954 = vmatpush1.xpose.msra.mxu0 %v1546
    %1955 = vmatprep.subr.mxu0 0.0
    %1956 = vmatpush2.xpose.msra.mxu0 0.0
    %1957 = vmatprep.subr.mxu0 0.0
    %1958 = vmatpush2.xpose.msra.mxu0 0.0
    %1959 = vmatprep.subr.mxu0 0.0
    %1960 = vmatpush2.xpose.msra.mxu0 0.0
    %1961 = vmatprep.subr.mxu0 0.0
    %1962 = vmatpush2.xpose.msra.mxu0 0.0
    %1963 = vmatprep.subr.mxu0 0.0
    %1964 = vmatpush2.xpose.msra.mxu0 0.0
    %1965 = vmatprep.subr.mxu0 0.0
    %1966 = vmatpush2.xpose.msra.mxu0 0.0
    %1967 = vmatprep.subr.mxu0 0.0
    %1968 = vmatpush2.xpose.msra.mxu0 0.0
    %1969 = vmatprep.subr.mxu0 0.0
    %1970 = vmatpush2.xpose.msra.mxu0 0.0
    %1971 = vmatprep.subr.mxu0 0.0
    %1972 = vmatpush2.xpose.msra.mxu0 0.0
    %1973 = vmatprep.subr.mxu0 0.0
    %1974 = vmatpush2.xpose.msra.mxu0 0.0
    %1975 = vmatprep.subr.mxu0 0.0
    %1976 = vmatpush2.xpose.msra.mxu0 0.0
    %1977 = vmatprep.subr.mxu0 0.0
    %1978 = vmatpush2.xpose.msra.mxu0 0.0
    %1979 = vmatprep.subr.mxu0 0.0
    %1980 = vmatpush2.xpose.msra.mxu0 0.0
    %1981 = vmatprep.subr.mxu0 0.0
    %1982 = vmatpush2.xpose.msra.mxu0 0.0
    %1983 = vmatprep.subr.mxu0 0.0
    %1984 = vmatpush2.xpose.msra.mxu0 0.0
    %1985 = vmatprep.subr.mxu0 0.0
    %1986 = vmatpush2.xpose.msra.mxu0 0.0
    %1987 = vmatprep.mubr.f32.mxu0 0.0
    %1988 = vmatmul.mubr.f32.gmra.mxu0 %v1616
    %v1989 = vpop.f32.mrf.mxu0
    %v1990 = vadd.f32 0.0, %v1989
    %v1991 = vpop.f32.mrf.mxu0
    %1992 = vdwg.mxu0
    %1993 = vmatprep.subr.mxu0 0.0
    %1994 = vmatpush1.xpose.msra.mxu0 0.0
    %1995 = vmatprep.subr.mxu0 0.0
    %1996 = vmatpush1.xpose.msra.mxu0 0.0
    %1997 = vmatprep.subr.mxu0 0.0
    %1998 = vmatpush1.xpose.msra.mxu0 0.0
    %1999 = vmatprep.subr.mxu0 0.0
    %2000 = vmatpush1.xpose.msra.mxu0 0.0
    %2001 = vmatprep.subr.mxu0 0.0
    %2002 = vmatpush1.xpose.msra.mxu0 0.0
    %2003 = vmatprep.subr.mxu0 0.0
    %2004 = vmatpush1.xpose.msra.mxu0 0.0
    %2005 = vmatprep.subr.mxu0 0.0
    %2006 = vmatpush1.xpose.msra.mxu0 0.0
    %2007 = vmatprep.subr.mxu0 0.0
    %2008 = vmatpush1.xpose.msra.mxu0 0.0
    %2009 = vmatprep.subr.mxu0 0.0
    %2010 = vmatpush1.xpose.msra.mxu0 0.0
    %2011 = vmatprep.subr.mxu0 0.0
    %2012 = vmatpush1.xpose.msra.mxu0 0.0
    %2013 = vmatprep.subr.mxu0 0.0
    %2014 = vmatpush1.xpose.msra.mxu0 0.0
    %2015 = vmatprep.subr.mxu0 0.0
    %2016 = vmatpush1.xpose.msra.mxu0 0.0
    %2017 = vmatprep.subr.mxu0 0.0
    %2018 = vmatpush1.xpose.msra.mxu0 0.0
    %2019 = vmatprep.subr.mxu0 0.0
    %2020 = vmatpush1.xpose.msra.mxu0 0.0
    %2021 = vmatprep.subr.mxu0 0.0
    %2022 = vmatpush1.xpose.msra.mxu0 0.0
    %2023 = vmatprep.subr.mxu0 0.0
    %2024 = vmatpush1.xpose.msra.mxu0 %v1547
    %2025 = vmatprep.subr.mxu0 0.0
    %2026 = vmatpush2.xpose.msra.mxu0 0.0
    %2027 = vmatprep.subr.mxu0 0.0
    %2028 = vmatpush2.xpose.msra.mxu0 0.0
    %2029 = vmatprep.subr.mxu0 0.0
    %2030 = vmatpush2.xpose.msra.mxu0 0.0
    %2031 = vmatprep.subr.mxu0 0.0
    %2032 = vmatpush2.xpose.msra.mxu0 0.0
    %2033 = vmatprep.subr.mxu0 0.0
    %2034 = vmatpush2.xpose.msra.mxu0 0.0
    %2035 = vmatprep.subr.mxu0 0.0
    %2036 = vmatpush2.xpose.msra.mxu0 0.0
    %2037 = vmatprep.subr.mxu0 0.0
    %2038 = vmatpush2.xpose.msra.mxu0 0.0
    %2039 = vmatprep.subr.mxu0 0.0
    %2040 = vmatpush2.xpose.msra.mxu0 0.0
    %2041 = vmatprep.subr.mxu0 0.0
    %2042 = vmatpush2.xpose.msra.mxu0 0.0
    %2043 = vmatprep.subr.mxu0 0.0
    %2044 = vmatpush2.xpose.msra.mxu0 0.0
    %2045 = vmatprep.subr.mxu0 0.0
    %2046 = vmatpush2.xpose.msra.mxu0 0.0
    %2047 = vmatprep.subr.mxu0 0.0
    %2048 = vmatpush2.xpose.msra.mxu0 0.0
    %2049 = vmatprep.subr.mxu0 0.0
    %2050 = vmatpush2.xpose.msra.mxu0 0.0
    %2051 = vmatprep.subr.mxu0 0.0
    %2052 = vmatpush2.xpose.msra.mxu0 0.0
    %2053 = vmatprep.subr.mxu0 0.0
    %2054 = vmatpush2.xpose.msra.mxu0 0.0
    %2055 = vmatprep.subr.mxu0 0.0
    %2056 = vmatpush2.xpose.msra.mxu0 0.0
    %2057 = vmatprep.mubr.f32.mxu0 0.0
    %2058 = vmatmul.mubr.f32.gmra.mxu0 %v1630
    %v2059 = vpop.f32.mrf.mxu0
    %v2060 = vadd.f32 0.0, %v2059
    %v2061 = vpop.f32.mrf.mxu0
    %2062 = vdwg.mxu0
    %2063 = vmatprep.subr.mxu0 0.0
    %2064 = vmatpush1.xpose.msra.mxu0 0.0
    %2065 = vmatprep.subr.mxu0 0.0
    %2066 = vmatpush1.xpose.msra.mxu0 0.0
    %2067 = vmatprep.subr.mxu0 0.0
    %2068 = vmatpush1.xpose.msra.mxu0 0.0
    %2069 = vmatprep.subr.mxu0 0.0
    %2070 = vmatpush1.xpose.msra.mxu0 0.0
    %2071 = vmatprep.subr.mxu0 0.0
    %2072 = vmatpush1.xpose.msra.mxu0 0.0
    %2073 = vmatprep.subr.mxu0 0.0
    %2074 = vmatpush1.xpose.msra.mxu0 0.0
    %2075 = vmatprep.subr.mxu0 0.0
    %2076 = vmatpush1.xpose.msra.mxu0 0.0
    %2077 = vmatprep.subr.mxu0 0.0
    %2078 = vmatpush1.xpose.msra.mxu0 0.0
    %2079 = vmatprep.subr.mxu0 0.0
    %2080 = vmatpush1.xpose.msra.mxu0 0.0
    %2081 = vmatprep.subr.mxu0 0.0
    %2082 = vmatpush1.xpose.msra.mxu0 0.0
    %2083 = vmatprep.subr.mxu0 0.0
    %2084 = vmatpush1.xpose.msra.mxu0 0.0
    %2085 = vmatprep.subr.mxu0 0.0
    %2086 = vmatpush1.xpose.msra.mxu0 0.0
    %2087 = vmatprep.subr.mxu0 0.0
    %2088 = vmatpush1.xpose.msra.mxu0 0.0
    %2089 = vmatprep.subr.mxu0 0.0
    %2090 = vmatpush1.xpose.msra.mxu0 0.0
    %2091 = vmatprep.subr.mxu0 0.0
    %2092 = vmatpush1.xpose.msra.mxu0 0.0
    %2093 = vmatprep.subr.mxu0 0.0
    %2094 = vmatpush1.xpose.msra.mxu0 %v1548
    %2095 = vmatprep.subr.mxu0 0.0
    %2096 = vmatpush2.xpose.msra.mxu0 0.0
    %2097 = vmatprep.subr.mxu0 0.0
    %2098 = vmatpush2.xpose.msra.mxu0 0.0
    %2099 = vmatprep.subr.mxu0 0.0
    %2100 = vmatpush2.xpose.msra.mxu0 0.0
    %2101 = vmatprep.subr.mxu0 0.0
    %2102 = vmatpush2.xpose.msra.mxu0 0.0
    %2103 = vmatprep.subr.mxu0 0.0
    %2104 = vmatpush2.xpose.msra.mxu0 0.0
    %2105 = vmatprep.subr.mxu0 0.0
    %2106 = vmatpush2.xpose.msra.mxu0 0.0
    %2107 = vmatprep.subr.mxu0 0.0
    %2108 = vmatpush2.xpose.msra.mxu0 0.0
    %2109 = vmatprep.subr.mxu0 0.0
    %2110 = vmatpush2.xpose.msra.mxu0 0.0
    %2111 = vmatprep.subr.mxu0 0.0
    %2112 = vmatpush2.xpose.msra.mxu0 0.0
    %2113 = vmatprep.subr.mxu0 0.0
    %2114 = vmatpush2.xpose.msra.mxu0 0.0
    %2115 = vmatprep.subr.mxu0 0.0
    %2116 = vmatpush2.xpose.msra.mxu0 0.0
    %2117 = vmatprep.subr.mxu0 0.0
    %2118 = vmatpush2.xpose.msra.mxu0 0.0
    %2119 = vmatprep.subr.mxu0 0.0
    %2120 = vmatpush2.xpose.msra.mxu0 0.0
    %2121 = vmatprep.subr.mxu0 0.0
    %2122 = vmatpush2.xpose.msra.mxu0 0.0
    %2123 = vmatprep.subr.mxu0 0.0
    %2124 = vmatpush2.xpose.msra.mxu0 0.0
    %2125 = vmatprep.subr.mxu0 0.0
    %2126 = vmatpush2.xpose.msra.mxu0 0.0
    %2127 = vmatprep.mubr.f32.mxu0 0.0
    %2128 = vmatmul.mubr.f32.gmra.mxu0 %v1632
    %v2129 = vpop.f32.mrf.mxu0
    %v2130 = vadd.f32 0.0, %v2129
    %v2131 = vpop.f32.mrf.mxu0
    %2132 = vdwg.mxu0
    %2133 = vmatprep.subr.mxu0 0.0
    %2134 = vmatpush1.xpose.msra.mxu0 0.0
    %2135 = vmatprep.subr.mxu0 0.0
    %2136 = vmatpush1.xpose.msra.mxu0 0.0
    %2137 = vmatprep.subr.mxu0 0.0
    %2138 = vmatpush1.xpose.msra.mxu0 0.0
    %2139 = vmatprep.subr.mxu0 0.0
    %2140 = vmatpush1.xpose.msra.mxu0 0.0
    %2141 = vmatprep.subr.mxu0 0.0
    %2142 = vmatpush1.xpose.msra.mxu0 0.0
    %2143 = vmatprep.subr.mxu0 0.0
    %2144 = vmatpush1.xpose.msra.mxu0 0.0
    %2145 = vmatprep.subr.mxu0 0.0
    %2146 = vmatpush1.xpose.msra.mxu0 0.0
    %2147 = vmatprep.subr.mxu0 0.0
    %2148 = vmatpush1.xpose.msra.mxu0 0.0
    %2149 = vmatprep.subr.mxu0 0.0
    %2150 = vmatpush1.xpose.msra.mxu0 0.0
    %2151 = vmatprep.subr.mxu0 0.0
    %2152 = vmatpush1.xpose.msra.mxu0 0.0
    %2153 = vmatprep.subr.mxu0 0.0
    %2154 = vmatpush1.xpose.msra.mxu0 0.0
    %2155 = vmatprep.subr.mxu0 0.0
    %2156 = vmatpush1.xpose.msra.mxu0 0.0
    %2157 = vmatprep.subr.mxu0 0.0
    %2158 = vmatpush1.xpose.msra.mxu0 0.0
    %2159 = vmatprep.subr.mxu0 0.0
    %2160 = vmatpush1.xpose.msra.mxu0 0.0
    %2161 = vmatprep.subr.mxu0 0.0
    %2162 = vmatpush1.xpose.msra.mxu0 0.0
    %2163 = vmatprep.subr.mxu0 0.0
    %2164 = vmatpush1.xpose.msra.mxu0 %v1549
    %2165 = vmatprep.subr.mxu0 0.0
    %2166 = vmatpush2.xpose.msra.mxu0 0.0
    %2167 = vmatprep.subr.mxu0 0.0
    %2168 = vmatpush2.xpose.msra.mxu0 0.0
    %2169 = vmatprep.subr.mxu0 0.0
    %2170 = vmatpush2.xpose.msra.mxu0 0.0
    %2171 = vmatprep.subr.mxu0 0.0
    %2172 = vmatpush2.xpose.msra.mxu0 0.0
    %2173 = vmatprep.subr.mxu0 0.0
    %2174 = vmatpush2.xpose.msra.mxu0 0.0
    %2175 = vmatprep.subr.mxu0 0.0
    %2176 = vmatpush2.xpose.msra.mxu0 0.0
    %2177 = vmatprep.subr.mxu0 0.0
    %2178 = vmatpush2.xpose.msra.mxu0 0.0
    %2179 = vmatprep.subr.mxu0 0.0
    %2180 = vmatpush2.xpose.msra.mxu0 0.0
    %2181 = vmatprep.subr.mxu0 0.0
    %2182 = vmatpush2.xpose.msra.mxu0 0.0
    %2183 = vmatprep.subr.mxu0 0.0
    %2184 = vmatpush2.xpose.msra.mxu0 0.0
    %2185 = vmatprep.subr.mxu0 0.0
    %2186 = vmatpush2.xpose.msra.mxu0 0.0
    %2187 = vmatprep.subr.mxu0 0.0
    %2188 = vmatpush2.xpose.msra.mxu0 0.0
    %2189 = vmatprep.subr.mxu0 0.0
    %2190 = vmatpush2.xpose.msra.mxu0 0.0
    %2191 = vmatprep.subr.mxu0 0.0
    %2192 = vmatpush2.xpose.msra.mxu0 0.0
    %2193 = vmatprep.subr.mxu0 0.0
    %2194 = vmatpush2.xpose.msra.mxu0 0.0
    %2195 = vmatprep.subr.mxu0 0.0
    %2196 = vmatpush2.xpose.msra.mxu0 0.0
    %2197 = vmatprep.mubr.f32.mxu0 0.0
    %2198 = vmatmul.mubr.f32.gmra.mxu0 %v1634
    %v2199 = vpop.f32.mrf.mxu0
    %v2200 = vadd.f32 0.0, %v2199
    %v2201 = vpop.f32.mrf.mxu0
    %2202 = vdwg.mxu0
    %v2203 = vmul.f32 %v1710, 2.0
    %v2204 = vmul.f32 %v1780, 2.0
    %v2205 = vmul.f32 %v1850, 2.0
    %v2206 = vmul.f32 %v1920, 2.0
    %v2207 = vmul.f32 %v1990, 2.0
    %v2208 = vmul.f32 %v2060, 2.0
    %v2209 = vmul.f32 %v2130, 2.0
    %v2210 = vmul.f32 %v2200, 2.0
    %v2219 = vrot.slane %v2204, 7
    %v2220 = vsel %vm1468, %v2219, %v2203
    %v2221 = vrot.slane %v2205, 6
    %v2222 = vsel %vm1471, %v2221, %v2220
    %v2223 = vrot.slane %v2206, 5
    %v2224 = vsel %vm1474, %v2223, %v2222
    %v2225 = vrot.slane %v2207, 4
    %v2226 = vsel %vm1477, %v2225, %v2224
    %v2227 = vrot.slane %v2208, 3
    %v2228 = vsel %vm1480, %v2227, %v2226
    %v2229 = vrot.slane %v2209, 2
    %v2230 = vsel %vm1483, %v2229, %v2228
    %v2231 = vrot.slane %v2210, 1
    %v2232 = vsel %vm1486, %v2231, %v2230
    %v2234 = vsub.f32 %v1552, %v2232
    %v2243 = vlaneseq
    %v2244 = vshrl.u32 %v2243, 7
    %v2245 = vsub.s32 %v1499, %v2244
    %v2246 = vrot.slane %v1563, %v2245
    %v2247 = vlaneseq
    %v2248 = vshrl.u32 %v2247, 7
    %v2249 = vsub.s32 %v1499, %v2248
    %v2250 = vrot.slane %v1566, %v2249
    %v2251 = vlaneseq
    %v2252 = vshrl.u32 %v2251, 7
    %v2253 = vsub.s32 %v1499, %v2252
    %v2254 = vrot.slane %v1569, %v2253
    %v2255 = vlaneseq
    %v2256 = vshrl.u32 %v2255, 7
    %v2257 = vsub.s32 %v1499, %v2256
    %v2258 = vrot.slane %v1572, %v2257
    %v2259 = vlaneseq
    %v2260 = vshrl.u32 %v2259, 7
    %v2261 = vsub.s32 %v1499, %v2260
    %v2262 = vrot.slane %v1575, %v2261
    %v2263 = vlaneseq
    %v2264 = vshrl.u32 %v2263, 7
    %v2265 = vsub.s32 %v1499, %v2264
    %v2266 = vrot.slane %v1578, %v2265
    %v2267 = vlaneseq
    %v2268 = vshrl.u32 %v2267, 7
    %v2269 = vsub.s32 %v1499, %v2268
    %v2270 = vrot.slane %v1581, %v2269
    %v2271 = vlaneseq
    %v2272 = vshrl.u32 %v2271, 7
    %v2273 = vsub.s32 %v1499, %v2272
    %v2274 = vrot.slane %v1584, %v2273
    %v2275 = vsel %vm1468, %v2250, %v2246
    %v2276 = vsel %vm1471, %v2254, %v2275
    %v2277 = vsel %vm1474, %v2258, %v2276
    %v2278 = vsel %vm1477, %v2262, %v2277
    %v2279 = vsel %vm1480, %v2266, %v2278
    %v2280 = vsel %vm1483, %v2270, %v2279
    %v2281 = vsel %vm1486, %v2274, %v2280
    %v2283 = vadd.f32 %v2234, %v2281
    %v2284 = vsub.f32 0.0, %v2283
    %v2285 = vmul.f32 %v1541, 0.5
    %v2286 = vmul.f32 %v2284, 0.5
    %v2287 = vadd.f32 %v2285, %v2286
    %v2288 = vmul.f32 %v2287, 5.0
    %v2289 = vld [vmem:[%s8] sm:$0xff]
    %v2290 = vadd.f32 %v2288, %v2289
    %vm2291 = vcmask 31744
    %v2292 = vsel %vm2291, %v2290, 0.0
    %2293 = vst [vmem:[%s9] sm:$0xff] %v2292
    // Predicated region
    $region38: #{rtn_forward.1} parent=1 // pred_check
      _
    $region39: #{rtn_forward.1} parent=1 // pred_check_branch
      %2295 = sbr.rel (0) target = $region41
    $region40: #{rtn_forward.1} parent=1 // pred_region
      _
    $region41: #{rtn_forward.1} parent=1 // pred_fallthru
      _
    // Predicated region
    $region42: #{rtn_forward.1} parent=1 // pred_check
      _
    $region43: #{rtn_forward.1} parent=1 // pred_check_branch
      %2297 = sbr.rel (0) target = $region45
    $region44: #{rtn_forward.1} parent=1 // pred_region
      %s2299 = ssub.s32 128, 128
      %2300 = vsyncadd [#allocation4], %s2299
      %s2302 = sshll.u32 [#allocation3], 4
      %s2303 = int_to_ptr.vmem [resolvable:$true] %s2302
      %2305 = dma.vmem_to_hbm [thread:$0]  %s2303, 128, %s10, [#allocation4]
    $region45: #{rtn_forward.1} parent=1 // pred_fallthru
      _
    // Predicated region
    $region46: #{rtn_forward.1} parent=1 // pred_check
      _
    $region47: #{rtn_forward.1} parent=1 // pred_check_branch
      %2307 = sbr.rel (0) target = $region49
    $region48: #{rtn_forward.1} parent=1 // pred_region
      _
    $region49: #{rtn_forward.1} parent=1 // pred_fallthru
      _
    // Predicated region
    $region50: #{rtn_forward.1} parent=1 // pred_check
      _
    $region51: #{rtn_forward.1} parent=1 // pred_check_branch
      %2309 = sbr.rel (0) target = $region53
    $region52: #{rtn_forward.1} parent=1 // pred_region
      %2310 = dma.done [#allocation4], 128
    $region53: #{rtn_forward.1} parent=1 // pred_fallthru
      _
    %2311 = vsyncpa [#allocation4], 1

</llo_original>
